<compile_context>
chip_gen: v5e
topology: v5e:2x2
jax: 0.10.0
libtpu: 0.0.40
codegen_flags: <defaults>
</compile_context>

<pallas_src>
import functools
import numpy as np
import jax
import jax.numpy as jnp
from jax.experimental import pallas as pl
from jax.experimental.pallas import tpu as pltpu

DIM = 768              # BERT hidden size used by Adapter(768, 128) in the module
DOWN = 128             # adapter bottleneck ("down" in NMTModel.__init__)
MAX_ENC_ROW_TILE = 512 # encoder adapter row tile upper bound
MAX_DEC_ROW_TILE = 256 # decoder adapter / flash q row tile upper bound
MAX_KV_TILE = 512      # memory (kv) tile upper bound for flash attention
VMEM_LIMIT = 32 * 1024 * 1024  # within the v7x 64 MiB (32 MiB scoped) budget


def _round_up(n, m):
    return ((n + m - 1) // m) * m


def _row_tile(n, cap):
    # biggest tile that does not over-pad tiny inputs, capped at `cap`
    return min(cap, _round_up(n, 8))


def _pad_rows(x2d, n_pad):
    n = x2d.shape[0]
    if n_pad != n:
        x2d = jnp.pad(x2d, ((0, n_pad - n), (0, 0)))
    return x2d


# ----------------------------- Pallas kernels ------------------------------

def _adapter_stack_kernel(*refs, n_adapters, with_ctx):
    # refs = x, [ctx], (W_down, b_down, W_up, b_up) * n_adapters, out
    # out = adapter_n(...adapter_1(x [+ ctx])...), each adapter:
    #   y = upstream(tanh(downstream(y))) + y
    x_ref = refs[0]
    o_ref = refs[-1]
    base = 1
    x = x_ref[...].astype(jnp.float32)
    if with_ctx:
        x = x + refs[1][...].astype(jnp.float32)
        base = 2
    w = refs[base:-1]
    for a in range(n_adapters):
        wd, bd, wu, bu = w[4 * a:4 * a + 4]
        h = jnp.tanh(
            jnp.dot(x.astype(jnp.bfloat16), wd[...],
                    preferred_element_type=jnp.float32) + bd[...])
        x = (jnp.dot(h.astype(jnp.bfloat16), wu[...],
                     preferred_element_type=jnp.float32) + bu[...] + x)
    o_ref[...] = x.astype(o_ref.dtype)


def adapter_stack(x2d, adapters, ctx=None, *, tm):
    """Apply a fused chain of Adapters to a padded [N, DIM] slab (N % tm == 0).

    If ctx is given, (x + ctx) is computed in-kernel before the first adapter.
    """
    n = x2d.shape[0]
    assert n % tm == 0
    row_spec = pl.BlockSpec((tm, DIM), lambda i: (i, 0))
    in_specs = [row_spec]
    operands = [x2d]
    if ctx is not None:
        in_specs.append(row_spec)
        operands.append(ctx)
    for (wd, bd, wu, bu) in adapters:
        in_specs += [pl.BlockSpec((DIM, DOWN), lambda i: (0, 0)),
                     pl.BlockSpec((1, DOWN), lambda i: (0, 0)),
                     pl.BlockSpec((DOWN, DIM), lambda i: (0, 0)),
                     pl.BlockSpec((1, DIM), lambda i: (0, 0))]
        operands += [wd, bd, wu, bu]
    kernel = functools.partial(_adapter_stack_kernel,
                               n_adapters=len(adapters),
                               with_ctx=ctx is not None)
    return pl.pallas_call(
        kernel,
        out_shape=jax.ShapeDtypeStruct((n, DIM), jnp.float32),
        grid=(n // tm,),
        in_specs=in_specs,
        out_specs=row_spec,
        compiler_params=pltpu.CompilerParams(
            dimension_semantics=("parallel",),
            vmem_limit_bytes=VMEM_LIMIT),
    )(*operands)


def _flash_ctx_kernel(q_ref, m_ref, ctx_ref, lse_ref, m_sc, l_sc, acc_sc,
                      *, mlen_valid, tkv, scale):
    # Tiled online softmax over the flattened memory bank (reduction axis = kv).
    kv = pl.program_id(1)

    @pl.when(kv == 0)
    def _():
        m_sc[...] = jnp.full_like(m_sc, -1e30)
        l_sc[...] = jnp.zeros_like(l_sc)
        acc_sc[...] = jnp.zeros_like(acc_sc)

    q = q_ref[...].astype(jnp.bfloat16)
    k = m_ref[...]                                   # bf16 memory tile
    s = jax.lax.dot_general(q, k, (((1,), (1,)), ((), ())),
                            preferred_element_type=jnp.float32) * scale
    col = kv * tkv + jax.lax.broadcasted_iota(jnp.int32, s.shape, 1)
    s = jnp.where(col < mlen_valid, s, -1e30)        # mask padded memory rows

    m_new = jnp.maximum(m_sc[...], jnp.max(s, axis=-1, keepdims=True))
    alpha = jnp.exp(m_sc[...] - m_new)
    p = jnp.exp(s - m_new)
    l_sc[...] = alpha * l_sc[...] + jnp.sum(p, axis=-1, keepdims=True)
    acc_sc[...] = alpha * acc_sc[...] + jnp.dot(
        p.astype(jnp.bfloat16), k, preferred_element_type=jnp.float32)
    m_sc[...] = m_new

    @pl.when(kv == pl.num_programs(1) - 1)
    def _():
        ctx_ref[...] = acc_sc[...] * pl.reciprocal(l_sc[...], approx=True)
        lse_ref[...] = m_sc[...] + jnp.log(l_sc[...])


def flash_cross_attention(q2d, mem_bf16, mlen_valid, *, tq, tkv):
    """softmax(Q K^T / sqrt(d)) @ K over the padded memory bank.

    Returns (context [N, DIM] f32, logsumexp [N, 1] f32)."""
    n = q2d.shape[0]
    mlen_pad = mem_bf16.shape[0]
    kernel = functools.partial(_flash_ctx_kernel, mlen_valid=mlen_valid,
                               tkv=tkv, scale=1.0 / (DIM ** 0.5))
    ctx, lse = pl.pallas_call(
        kernel,
        out_shape=(jax.ShapeDtypeStruct((n, DIM), jnp.float32),
                   jax.ShapeDtypeStruct((n, 1), jnp.float32)),
        grid=(n // tq, mlen_pad // tkv),
        in_specs=[pl.BlockSpec((tq, DIM), lambda i, k: (i, 0)),
                  pl.BlockSpec((tkv, DIM), lambda i, k: (k, 0))],
        out_specs=(pl.BlockSpec((tq, DIM), lambda i, k: (i, 0)),
                   pl.BlockSpec((tq, 1), lambda i, k: (i, 0))),
        scratch_shapes=[pltpu.VMEM((tq, 1), jnp.float32),
                        pltpu.VMEM((tq, 1), jnp.float32),
                        pltpu.VMEM((tq, DIM), jnp.float32)],
        compiler_params=pltpu.CompilerParams(
            dimension_semantics=("parallel", "arbitrary"),
            vmem_limit_bytes=VMEM_LIMIT),
    )(q2d, mem_bf16)
    return ctx, lse


def _attn_probs_kernel(q_ref, m_ref, lse_ref, a_ref, *, mlen_valid, tkv, scale):
    # p = exp(s - lse) is exactly softmax(s); fully tiled, lane-dense stores.
    kv = pl.program_id(1)
    q = q_ref[...].astype(jnp.bfloat16)
    k = m_ref[...]
    s = jax.lax.dot_general(q, k, (((1,), (1,)), ((), ())),
                            preferred_element_type=jnp.float32) * scale
    p = jnp.exp(s - lse_ref[...])
    col = kv * tkv + jax.lax.broadcasted_iota(jnp.int32, s.shape, 1)
    a_ref[...] = jnp.where(col < mlen_valid, p, 0.0)


def attention_probs(q2d, mem_bf16, lse, mlen_valid, *, tq, tkv):
    """Materialize the attention probabilities (final decoder layer only)."""
    n = q2d.shape[0]
    mlen_pad = mem_bf16.shape[0]
    kernel = functools.partial(_attn_probs_kernel, mlen_valid=mlen_valid,
                               tkv=tkv, scale=1.0 / (DIM ** 0.5))
    return pl.pallas_call(
        kernel,
        out_shape=jax.ShapeDtypeStruct((n, mlen_pad), jnp.float32),
        grid=(n // tq, mlen_pad // tkv),
        in_specs=[pl.BlockSpec((tq, DIM), lambda i, k: (i, 0)),
                  pl.BlockSpec((tkv, DIM), lambda i, k: (k, 0)),
                  pl.BlockSpec((tq, 1), lambda i, k: (i, 0))],
        out_specs=pl.BlockSpec((tq, tkv), lambda i, k: (i, k)),
        compiler_params=pltpu.CompilerParams(
            dimension_semantics=("parallel", "parallel"),
            vmem_limit_bytes=VMEM_LIMIT),
    )(q2d, mem_bf16, lse)


# ------------------------------ parameters ---------------------------------

def _init_adapter(key):
    k = jax.random.split(key, 4)
    # bf16 weights feed the MXU; f32 biases added to the f32 accumulator.
    return (
        (0.02 * jax.random.normal(k[0], (DIM, DOWN), jnp.float32)).astype(jnp.bfloat16),
        0.02 * jax.random.normal(k[1], (1, DOWN), jnp.float32),
        (0.02 * jax.random.normal(k[2], (DOWN, DIM), jnp.float32)).astype(jnp.bfloat16),
        0.02 * jax.random.normal(k[3], (1, DIM), jnp.float32),
    )


def init_params(key, vocab, n_enc_layers, n_dec_layers):
    keys = jax.random.split(key, 3 + 2 * n_enc_layers + 3 * n_dec_layers)
    params = {
        "word_emb": 0.02 * jax.random.normal(keys[0], (vocab, DIM), jnp.float32),
        "type_emb": 0.02 * jax.random.normal(keys[1], (2, DIM), jnp.float32),
        "tgt_emb": 0.02 * jax.random.normal(keys[2], (vocab, DIM), jnp.float32),
        "enc_layers": [],
        "dec_layers": [],
    }
    idx = 3
    for _ in range(n_enc_layers):
        params["enc_layers"].append({
            "attn_adapter": _init_adapter(keys[idx]),
            "ffn_adapter": _init_adapter(keys[idx + 1]),
        })
        idx += 2
    for _ in range(n_dec_layers):
        params["dec_layers"].append({
            "attn_adapter": _init_adapter(keys[idx]),
            "context_adapter": _init_adapter(keys[idx + 1]),
            "ffn_adapter": _init_adapter(keys[idx + 2]),
        })
        idx += 3
    return params


# ------------------------------ NMTModel.forward ----------------------------

def nmt_forward(params, src, tgt, lengths, segment_table):
    """src: [src_len, batch, 1] int32; tgt: [tgt_len, batch] int32;
    lengths: [batch] int32; segment_table: bool table over the vocab."""
    src_np = np.asarray(src)
    lengths_np = np.asarray(lengths)
    src_len, batch, _ = src_np.shape

    tgt = tgt[:-1]                                     # tgt = tgt[:-1]

    # --- token_type_ids from the segment-table alternation loop (vectorized) ---
    tok = src_np[:, :, 0]                              # [src_len, batch]
    hits = segment_table[tok]                          # segment[int(b)] per token
    flips = np.cumsum(hits, axis=0) - hits             # exclusive cumsum over time
    token_type = ((flips % 2) == 0).astype(np.int32).T  # ma starts True -> 1

    # attention_mask = src[:, :, 0].T.eq(0) ^ ones  ==  (tokens != 0)
    mask = (tok.T != 0)
    # TODO(synk): mask/token_type would feed the real BertModel self-attention,
    # which is an external checkpointed module and is not reproducible here.
    del mask

    # --- "encoder": embeddings + fused per-layer adapter hot path (Pallas) ---
    tokens_bt = jnp.asarray(tok.T)                     # [batch, src_len]
    emb = params["word_emb"][tokens_bt] + params["type_emb"][jnp.asarray(token_type)]
    enc_state = emb                                    # output_embeddings=True

    n_enc = batch * src_len
    tm_enc = _row_tile(n_enc, MAX_ENC_ROW_TILE)
    n_enc_pad = _round_up(n_enc, tm_enc)
    x = _pad_rows(emb.reshape(n_enc, DIM), n_enc_pad)  # pad once per forward
    for layer in params["enc_layers"]:
        # TODO(synk): frozen BERT self-attention + FFN sublayers (external
        # checkpoint weights) sit between these adapters in the real model.
        x = adapter_stack(x, [layer["attn_adapter"], layer["ffn_adapter"]],
                          tm=tm_enc)
    memory_bank = x[:n_enc].reshape(batch, src_len, DIM)

    # --- length-based unpad + concat (torch.cat over [:lengths[i], i:i+1, :]) ---
    # Note: as in the original module, the decoder attends over the
    # batch-flattened memory bank (memory_lengths = lengths.sum()).
    memory_flat = jnp.concatenate(
        [memory_bank[i, :int(lengths_np[i]), :] for i in range(batch)], axis=0)
    enc_flat = jnp.concatenate(
        [enc_state[i, :int(lengths_np[i]), :] for i in range(batch)], axis=0)
    full_lengths = int(lengths_np.sum())
    del enc_flat
    # TODO(synk): decoder.init_state only records src/memory state; no compute.

    # memory bank: pad to a 128-multiple kv tile and pre-cast to bf16 ONCE.
    tkv = min(MAX_KV_TILE, _round_up(full_lengths, 128))
    mlen_pad = _round_up(full_lengths, tkv)
    mem_bf16 = _pad_rows(memory_flat, mlen_pad).astype(jnp.bfloat16)

    # --- "decoder": fused adapters + flash cross-attention (Pallas) ---
    t_len = tgt.shape[0]
    n_dec = t_len * batch
    tm_dec = _row_tile(n_dec, MAX_DEC_ROW_TILE)
    n_dec_pad = _round_up(n_dec, tm_dec)
    y = _pad_rows(params["tgt_emb"][tgt].reshape(n_dec, DIM), n_dec_pad)

    attn_w = None
    n_dec_layers = len(params["dec_layers"])
    for li, layer in enumerate(params["dec_layers"]):
        # TODO(synk): frozen transformer-decoder self-attn sublayer is external.
        y = adapter_stack(y, [layer["attn_adapter"]], tm=tm_dec)       # a.attn_adapter
        ctx, lse = flash_cross_attention(y, mem_bf16, full_lengths,
                                         tq=tm_dec, tkv=tkv)
        if li == n_dec_layers - 1:
            # attention probabilities are only needed for the returned dict.
            attn_w = attention_probs(y, mem_bf16, lse, full_lengths,
                                     tq=tm_dec, tkv=tkv)
        # TODO(synk): frozen decoder FFN sublayer is external.
        # Fused: (y + ctx) -> context_adapter -> ffn_adapter in one kernel.
        y = adapter_stack(y, [layer["context_adapter"], layer["ffn_adapter"]],
                          ctx=ctx, tm=tm_dec)

    dec_out = y[:n_dec].reshape(t_len, batch, DIM)     # [tgt_len-1, batch, hidden]
    attns = {"std": attn_w[:n_dec, :full_lengths]
             .reshape(t_len, batch, full_lengths)}
    return dec_out, attns, None


# ----------------------------------- main -----------------------------------

if __name__ == "__main__":
    vocab = 64
    src_len, batch, tgt_len = 8, 2, 6
    n_enc_layers, n_dec_layers = 2, 2

    key = jax.random.PRNGKey(0)
    pkey, skey, tkey = jax.random.split(key, 3)
    params = init_params(pkey, vocab, n_enc_layers, n_dec_layers)

    src = jax.random.randint(skey, (src_len, batch, 1), 1, vocab, dtype=jnp.int32)
    tgt = jax.random.randint(tkey, (tgt_len, batch), 1, vocab, dtype=jnp.int32)
    lengths = jnp.array([7, 5], dtype=jnp.int32)

    # zero out padded positions past each length (padded LongTensor convention)
    src_np = np.array(src)
    for b in range(batch):
        src_np[int(lengths[b]):, b, 0] = 0
    src = jnp.asarray(src_np)

    # synthetic deterministic stand-in for segment.pkl
    segment_table = np.array([(v % 3) == 0 for v in range(vocab)], dtype=bool)

    dec_out, attns, _ = nmt_forward(params, src, tgt, lengths, segment_table)
    jax.block_until_ready(dec_out)
    jax.block_until_ready(attns["std"])

    assert dec_out.shape == (tgt_len - 1, batch, DIM)
    assert attns["std"].shape == (tgt_len - 1, batch, int(np.array(lengths).sum()))
    assert np.isfinite(np.array(dec_out)).all()
    assert np.isfinite(np.array(attns["std"])).all()
    print("KERNEL_OK")
</pallas_src>

<mosaic_0001>
module attributes {stable_mosaic.version = 11 : i64} {
  func.func @_adapter_stack_kernel(%arg0: i32, %arg1: memref<16x768xf32, #tpu.memory_space<vmem>>, %arg2: memref<768x128xbf16, #tpu.memory_space<vmem>>, %arg3: memref<1x128xf32, #tpu.memory_space<vmem>>, %arg4: memref<128x768xbf16, #tpu.memory_space<vmem>>, %arg5: memref<1x768xf32, #tpu.memory_space<vmem>>, %arg6: memref<768x128xbf16, #tpu.memory_space<vmem>>, %arg7: memref<1x128xf32, #tpu.memory_space<vmem>>, %arg8: memref<128x768xbf16, #tpu.memory_space<vmem>>, %arg9: memref<1x768xf32, #tpu.memory_space<vmem>>, %arg10: memref<16x768xf32, #tpu.memory_space<vmem>>) attributes {dimension_semantics = [#tpu.dimension_semantics<parallel>], iteration_bounds = array<i64: 1>, scalar_prefetch = 0 : i64, scratch_operands = 0 : i64, tpu.core_type = #tpu.core_type<tc>, window_params = [{transform_indices = @transform_0, window_bounds = array<i64: 16, 768>}, {pipeline_mode = #tpu.pipeline_mode<synchronous>, transform_indices = @transform_1, window_bounds = array<i64: 768, 128>}, {pipeline_mode = #tpu.pipeline_mode<synchronous>, transform_indices = @transform_2, window_bounds = array<i64: 1, 128>}, {pipeline_mode = #tpu.pipeline_mode<synchronous>, transform_indices = @transform_3, window_bounds = array<i64: 128, 768>}, {pipeline_mode = #tpu.pipeline_mode<synchronous>, transform_indices = @transform_4, window_bounds = array<i64: 1, 768>}, {pipeline_mode = #tpu.pipeline_mode<synchronous>, transform_indices = @transform_5, window_bounds = array<i64: 768, 128>}, {pipeline_mode = #tpu.pipeline_mode<synchronous>, transform_indices = @transform_6, window_bounds = array<i64: 1, 128>}, {pipeline_mode = #tpu.pipeline_mode<synchronous>, transform_indices = @transform_7, window_bounds = array<i64: 128, 768>}, {pipeline_mode = #tpu.pipeline_mode<synchronous>, transform_indices = @transform_8, window_bounds = array<i64: 1, 768>}, {transform_indices = @transform_9, window_bounds = array<i64: 16, 768>}]} {
    %c0 = arith.constant 0 : index
    %c0_0 = arith.constant 0 : index
    %0 = vector.load %arg1[%c0, %c0_0] : memref<16x768xf32, #tpu.memory_space<vmem>>, vector<16x768xf32>
    %1 = arith.truncf %0 : vector<16x768xf32> to vector<16x768xbf16>
    %c0_1 = arith.constant 0 : index
    %c0_2 = arith.constant 0 : index
    %2 = vector.load %arg2[%c0_1, %c0_2] : memref<768x128xbf16, #tpu.memory_space<vmem>>, vector<768x128xbf16>
    %cst = arith.constant dense<0.000000e+00> : vector<16x128xf32>
    %3 = tpu.matmul %1, %2, %cst {dimension_numbers = #tpu.dot_dimension_numbers<[1], [0], [0], [1], [0, 0, 1, 1], [], []>} : vector<16x768xbf16>, vector<768x128xbf16>, vector<16x128xf32> -> vector<16x128xf32>
    %c0_3 = arith.constant 0 : index
    %c0_4 = arith.constant 0 : index
    %4 = vector.load %arg3[%c0_3, %c0_4] : memref<1x128xf32, #tpu.memory_space<vmem>>, vector<1x128xf32>
    %5 = vector.broadcast %4 : vector<1x128xf32> to vector<16x128xf32>
    %6 = arith.addf %3, %5 : vector<16x128xf32>
    %7 = math.tanh %6 : vector<16x128xf32>
    %8 = arith.truncf %7 : vector<16x128xf32> to vector<16x128xbf16>
    %c0_5 = arith.constant 0 : index
    %c0_6 = arith.constant 0 : index
    %9 = vector.load %arg4[%c0_5, %c0_6] : memref<128x768xbf16, #tpu.memory_space<vmem>>, vector<128x768xbf16>
    %cst_7 = arith.constant dense<0.000000e+00> : vector<16x768xf32>
    %10 = tpu.matmul %8, %9, %cst_7 {dimension_numbers = #tpu.dot_dimension_numbers<[1], [0], [0], [1], [0, 0, 1, 1], [], []>} : vector<16x128xbf16>, vector<128x768xbf16>, vector<16x768xf32> -> vector<16x768xf32>
    %c0_8 = arith.constant 0 : index
    %c0_9 = arith.constant 0 : index
    %11 = vector.load %arg5[%c0_8, %c0_9] : memref<1x768xf32, #tpu.memory_space<vmem>>, vector<1x768xf32>
    %12 = vector.broadcast %11 : vector<1x768xf32> to vector<16x768xf32>
    %13 = arith.addf %10, %12 : vector<16x768xf32>
    %14 = arith.addf %13, %0 : vector<16x768xf32>
    %15 = arith.truncf %14 : vector<16x768xf32> to vector<16x768xbf16>
    %c0_10 = arith.constant 0 : index
    %c0_11 = arith.constant 0 : index
    %16 = vector.load %arg6[%c0_10, %c0_11] : memref<768x128xbf16, #tpu.memory_space<vmem>>, vector<768x128xbf16>
    %cst_12 = arith.constant dense<0.000000e+00> : vector<16x128xf32>
    %17 = tpu.matmul %15, %16, %cst_12 {dimension_numbers = #tpu.dot_dimension_numbers<[1], [0], [0], [1], [0, 0, 1, 1], [], []>} : vector<16x768xbf16>, vector<768x128xbf16>, vector<16x128xf32> -> vector<16x128xf32>
    %c0_13 = arith.constant 0 : index
    %c0_14 = arith.constant 0 : index
    %18 = vector.load %arg7[%c0_13, %c0_14] : memref<1x128xf32, #tpu.memory_space<vmem>>, vector<1x128xf32>
    %19 = vector.broadcast %18 : vector<1x128xf32> to vector<16x128xf32>
    %20 = arith.addf %17, %19 : vector<16x128xf32>
    %21 = math.tanh %20 : vector<16x128xf32>
    %22 = arith.truncf %21 : vector<16x128xf32> to vector<16x128xbf16>
    %c0_15 = arith.constant 0 : index
    %c0_16 = arith.constant 0 : index
    %23 = vector.load %arg8[%c0_15, %c0_16] : memref<128x768xbf16, #tpu.memory_space<vmem>>, vector<128x768xbf16>
    %cst_17 = arith.constant dense<0.000000e+00> : vector<16x768xf32>
    %24 = tpu.matmul %22, %23, %cst_17 {dimension_numbers = #tpu.dot_dimension_numbers<[1], [0], [0], [1], [0, 0, 1, 1], [], []>} : vector<16x128xbf16>, vector<128x768xbf16>, vector<16x768xf32> -> vector<16x768xf32>
    %c0_18 = arith.constant 0 : index
    %c0_19 = arith.constant 0 : index
    %25 = vector.load %arg9[%c0_18, %c0_19] : memref<1x768xf32, #tpu.memory_space<vmem>>, vector<1x768xf32>
    %26 = vector.broadcast %25 : vector<1x768xf32> to vector<16x768xf32>
    %27 = arith.addf %24, %26 : vector<16x768xf32>
    %28 = arith.addf %27, %14 : vector<16x768xf32>
    %c0_20 = arith.constant 0 : index
    %c0_21 = arith.constant 0 : index
    %29 = vector.load %arg10[%c0_20, %c0_21] : memref<16x768xf32, #tpu.memory_space<vmem>>, vector<16x768xf32>
    tpu.vector_store %arg10[%c0_20, %c0_21], %28 {strides = array<i32>} : memref<16x768xf32, #tpu.memory_space<vmem>>, vector<16x768xf32>,
    return
  }
  func.func @transform_0(%arg0: i32) -> (i32, i32) {
    %c0_i32 = arith.constant 0 : i32
    %c0_i32_0 = arith.constant 0 : i32
    return %arg0, %c0_i32 : i32, i32
  }
  func.func @transform_1(%arg0: i32) -> (i32, i32) {
    %c0_i32 = arith.constant 0 : i32
    %c0_i32_0 = arith.constant 0 : i32
    %c0_i32_1 = arith.constant 0 : i32
    return %c0_i32, %c0_i32_0 : i32, i32
  }
  func.func @transform_2(%arg0: i32) -> (i32, i32) {
    %c0_i32 = arith.constant 0 : i32
    %c0_i32_0 = arith.constant 0 : i32
    %c0_i32_1 = arith.constant 0 : i32
    return %c0_i32, %c0_i32_0 : i32, i32
  }
  func.func @transform_3(%arg0: i32) -> (i32, i32) {
    %c0_i32 = arith.constant 0 : i32
    %c0_i32_0 = arith.constant 0 : i32
    %c0_i32_1 = arith.constant 0 : i32
    return %c0_i32, %c0_i32_0 : i32, i32
  }
  func.func @transform_4(%arg0: i32) -> (i32, i32) {
    %c0_i32 = arith.constant 0 : i32
    %c0_i32_0 = arith.constant 0 : i32
    %c0_i32_1 = arith.constant 0 : i32
    return %c0_i32, %c0_i32_0 : i32, i32
  }
  func.func @transform_5(%arg0: i32) -> (i32, i32) {
    %c0_i32 = arith.constant 0 : i32
    %c0_i32_0 = arith.constant 0 : i32
    %c0_i32_1 = arith.constant 0 : i32
    return %c0_i32, %c0_i32_0 : i32, i32
  }
  func.func @transform_6(%arg0: i32) -> (i32, i32) {
    %c0_i32 = arith.constant 0 : i32
    %c0_i32_0 = arith.constant 0 : i32
    %c0_i32_1 = arith.constant 0 : i32
    return %c0_i32, %c0_i32_0 : i32, i32
  }
  func.func @transform_7(%arg0: i32) -> (i32, i32) {
    %c0_i32 = arith.constant 0 : i32
    %c0_i32_0 = arith.constant 0 : i32
    %c0_i32_1 = arith.constant 0 : i32
    return %c0_i32, %c0_i32_0 : i32, i32
  }
  func.func @transform_8(%arg0: i32) -> (i32, i32) {
    %c0_i32 = arith.constant 0 : i32
    %c0_i32_0 = arith.constant 0 : i32
    %c0_i32_1 = arith.constant 0 : i32
    return %c0_i32, %c0_i32_0 : i32, i32
  }
  func.func @transform_9(%arg0: i32) -> (i32, i32) {
    %c0_i32 = arith.constant 0 : i32
    %c0_i32_0 = arith.constant 0 : i32
    return %arg0, %c0_i32 : i32, i32
  }
}

</mosaic_0001>

<llo_original>
// kernel: tpu_custom_call.1
$region0: #{tpu_custom_call.1}
  #allocation0 [shape = 'u32[]', space=smem, size = 0x4, offset = 0x4, fixed_abs, tag = 'smem constant byte address 0x4 - core index']
  #allocation1 [shape = 'u32[72,128]{1,0:T(1,128)}', space=vmem, size = 0x9000, scoped, tag = 'internal scratch']
  %s0 = inlined_call_operand.hbm [shape: f32[16,768], index: 0, kind: input, shape index: {}]
  %s1 = inlined_call_operand.hbm [shape: bf16[768,128], index: 1, kind: input, shape index: {}]
  %s2 = inlined_call_operand.vmem [shape: f32[1,128], index: 2, kind: input, shape index: {}]
  %s3 = inlined_call_operand.hbm [shape: bf16[128,768], index: 3, kind: input, shape index: {}]
  %s4 = inlined_call_operand.hbm [shape: f32[1,768], index: 4, kind: input, shape index: {}]
  %s5 = inlined_call_operand.hbm [shape: bf16[768,128], index: 5, kind: input, shape index: {}]
  %s6 = inlined_call_operand.hbm [shape: f32[1,128], index: 6, kind: input, shape index: {}]
  %s7 = inlined_call_operand.hbm [shape: bf16[128,768], index: 7, kind: input, shape index: {}]
  %s8 = inlined_call_operand.vmem [shape: f32[1,768], index: 8, kind: input, shape index: {}]
  %s9 = inlined_call_operand.hbm [shape: f32[16,768], index: 9, kind: output, shape index: {}]
  %s10 = sld [smem:[#allocation0]]
  $region74: #{tpu_custom_call.1} parent=0
    _
  %s12 = ssub.s32 1, %s10
  %s13 = scalar_select 0, %s12, %s10
  $region1: #{tpu_custom_call.1} parent=0
    #allocation2 [shape = 'u8[49152]{0}', space=vmem, size = 0xc000, scoped, tag = 'input window, operand 0, single buffered']
    #allocation3 [shape = 's32[1]{0}', space=sflag, size = 0x4, scoped, tag = 'scoped memory for tpu_custom_call.1']
    #allocation4 [shape = 's32[1]{0}', space=sflag, size = 0x4, scoped, tag = 'scoped memory for tpu_custom_call.1']
    #allocation5 [shape = 'u8[196608]{0}', space=vmem, size = 0x30000, scoped, tag = 'input window, operand 1, single buffered']
    #allocation6 [shape = 's32[1]{0}', space=sflag, size = 0x4, scoped, tag = 'scoped memory for tpu_custom_call.1']
    #allocation7 [shape = 'u8[196608]{0}', space=vmem, size = 0x30000, scoped, tag = 'input window, operand 3, single buffered']
    #allocation8 [shape = 'u8[3072]{0}', space=vmem, size = 0xc00, scoped, tag = 'input window, operand 4, single buffered']
    #allocation9 [shape = 's32[1]{0}', space=sflag, size = 0x4, scoped, tag = 'scoped memory for tpu_custom_call.1']
    #allocation10 [shape = 'u8[196608]{0}', space=vmem, size = 0x30000, scoped, tag = 'input window, operand 5, single buffered']
    #allocation11 [shape = 'u8[512]{0}', space=vmem, size = 0x400, scoped, tag = 'input window, operand 6, single buffered']
    #allocation12 [shape = 's32[1]{0}', space=sflag, size = 0x4, scoped, tag = 'scoped memory for tpu_custom_call.1']
    #allocation13 [shape = 'u8[196608]{0}', space=vmem, size = 0x30000, scoped, tag = 'input window, operand 7, single buffered']
    #allocation14 [shape = 'u8[49152]{0}', space=vmem, size = 0xc000, scoped, tag = 'output window, operand 0, single buffered']
    %14 = vsyncpa [#allocation3], 0
    %15 = vsyncpa [#allocation6], 0
    %16 = vsyncpa [#allocation9], 0
    %17 = vsyncpa [#allocation12], 0
    %18 = vsyncpa [#allocation4], 0
    // Predicated region
    $region2: #{tpu_custom_call.1} parent=1 // pred_check
      _
    $region3: #{tpu_custom_call.1} parent=1 // pred_check_branch
      %20 = sbr.rel (0) target = $region5
    $region4: #{tpu_custom_call.1} parent=1 // pred_region
      %22 = vsyncadd [#allocation3], 0
      %s23 = sshll.u32 %s0, 4
      %s24 = int_to_ptr.hbm [resolvable:$true] %s23
      %s25 = sshll.u32 [#allocation2], 4
      %s26 = int_to_ptr.vmem [resolvable:$true] %s25
      %31 = dma.hbm_to_vmem [thread:$0]  %s24, 1536, %s26, [#allocation3], 768, 768, 48
    $region5: #{tpu_custom_call.1} parent=1 // pred_fallthru
      _
    // Predicated region
    $region6: #{tpu_custom_call.1} parent=1 // pred_check
      _
    $region7: #{tpu_custom_call.1} parent=1 // pred_check_branch
      %33 = sbr.rel (0) target = $region9
    $region8: #{tpu_custom_call.1} parent=1 // pred_region
      %35 = vsyncadd [#allocation6], 0
      %s36 = sshll.u32 %s1, 4
      %s37 = int_to_ptr.hbm [resolvable:$true] %s36
      %s38 = sshll.u32 [#allocation5], 4
      %s39 = int_to_ptr.vmem [resolvable:$true] %s38
      %44 = dma.hbm_to_vmem [thread:$0]  %s37, 6144, %s39, [#allocation6], 64, 64, 4
    $region9: #{tpu_custom_call.1} parent=1 // pred_fallthru
      _
    // Predicated region
    $region10: #{tpu_custom_call.1} parent=1 // pred_check
      _
    $region11: #{tpu_custom_call.1} parent=1 // pred_check_branch
      %46 = sbr.rel (0) target = $region13
    $region12: #{tpu_custom_call.1} parent=1 // pred_region
      _
    $region13: #{tpu_custom_call.1} parent=1 // pred_fallthru
      _
    // Predicated region
    $region14: #{tpu_custom_call.1} parent=1 // pred_check
      _
    $region15: #{tpu_custom_call.1} parent=1 // pred_check_branch
      %48 = sbr.rel (0) target = $region17
    $region16: #{tpu_custom_call.1} parent=1 // pred_region
      %50 = vsyncadd [#allocation6], 0
      %s51 = sshll.u32 %s3, 4
      %s52 = int_to_ptr.hbm [resolvable:$true] %s51
      %s53 = sshll.u32 [#allocation7], 4
      %s54 = int_to_ptr.vmem [resolvable:$true] %s53
      %59 = dma.hbm_to_vmem [thread:$0]  %s52, 6144, %s54, [#allocation6], 384, 384, 24
    $region17: #{tpu_custom_call.1} parent=1 // pred_fallthru
      _
    // Predicated region
    $region18: #{tpu_custom_call.1} parent=1 // pred_check
      _
    $region19: #{tpu_custom_call.1} parent=1 // pred_check_branch
      %61 = sbr.rel (0) target = $region21
    $region20: #{tpu_custom_call.1} parent=1 // pred_region
      %63 = vsyncadd [#allocation9], 0
      %s65 = sshll.u32 %s4, 4
      %s66 = int_to_ptr.hbm [resolvable:$true] %s65
      %s67 = sshll.u32 [#allocation8], 4
      %s68 = int_to_ptr.vmem [resolvable:$true] %s67
      %70 = dma.hbm_to_vmem [thread:$0]  %s66, 96, %s68, [#allocation9]
    $region21: #{tpu_custom_call.1} parent=1 // pred_fallthru
      _
    // Predicated region
    $region22: #{tpu_custom_call.1} parent=1 // pred_check
      _
    $region23: #{tpu_custom_call.1} parent=1 // pred_check_branch
      %72 = sbr.rel (0) target = $region25
    $region24: #{tpu_custom_call.1} parent=1 // pred_region
      %74 = vsyncadd [#allocation9], 0
      %s75 = sshll.u32 %s5, 4
      %s76 = int_to_ptr.hbm [resolvable:$true] %s75
      %s77 = sshll.u32 [#allocation10], 4
      %s78 = int_to_ptr.vmem [resolvable:$true] %s77
      %83 = dma.hbm_to_vmem [thread:$0]  %s76, 6144, %s78, [#allocation9], 64, 64, 4
    $region25: #{tpu_custom_call.1} parent=1 // pred_fallthru
      _
    // Predicated region
    $region26: #{tpu_custom_call.1} parent=1 // pred_check
      _
    $region27: #{tpu_custom_call.1} parent=1 // pred_check_branch
      %85 = sbr.rel (0) target = $region29
    $region28: #{tpu_custom_call.1} parent=1 // pred_region
      %87 = vsyncadd [#allocation12], 0
      %s89 = sshll.u32 %s6, 4
      %s90 = int_to_ptr.hbm [resolvable:$true] %s89
      %s91 = sshll.u32 [#allocation11], 4
      %s92 = int_to_ptr.vmem [resolvable:$true] %s91
      %94 = dma.hbm_to_vmem [thread:$0]  %s90, 16, %s92, [#allocation12]
    $region29: #{tpu_custom_call.1} parent=1 // pred_fallthru
      _
    // Predicated region
    $region30: #{tpu_custom_call.1} parent=1 // pred_check
      _
    $region31: #{tpu_custom_call.1} parent=1 // pred_check_branch
      %96 = sbr.rel (0) target = $region33
    $region32: #{tpu_custom_call.1} parent=1 // pred_region
      %98 = vsyncadd [#allocation12], 0
      %s99 = sshll.u32 %s7, 4
      %s100 = int_to_ptr.hbm [resolvable:$true] %s99
      %s101 = sshll.u32 [#allocation13], 4
      %s102 = int_to_ptr.vmem [resolvable:$true] %s101
      %107 = dma.hbm_to_vmem [thread:$0]  %s100, 6144, %s102, [#allocation12], 384, 384, 24
    $region33: #{tpu_custom_call.1} parent=1 // pred_fallthru
      _
    // Predicated region
    $region34: #{tpu_custom_call.1} parent=1 // pred_check
      _
    $region35: #{tpu_custom_call.1} parent=1 // pred_check_branch
      %109 = sbr.rel (0) target = $region37
    $region36: #{tpu_custom_call.1} parent=1 // pred_region
      _
    $region37: #{tpu_custom_call.1} parent=1 // pred_fallthru
      _
    // Predicated region
    $region38: #{tpu_custom_call.1} parent=1 // pred_check
      _
    $region39: #{tpu_custom_call.1} parent=1 // pred_check_branch
      %111 = sbr.rel (0) target = $region41
    $region40: #{tpu_custom_call.1} parent=1 // pred_region
      %113 = dma.done [#allocation3], 1536
    $region41: #{tpu_custom_call.1} parent=1 // pred_fallthru
      _
    // Predicated region
    $region42: #{tpu_custom_call.1} parent=1 // pred_check
      _
    $region43: #{tpu_custom_call.1} parent=1 // pred_check_branch
      %115 = sbr.rel (0) target = $region45
    $region44: #{tpu_custom_call.1} parent=1 // pred_region
      %117 = dma.done [#allocation6], 6144
    $region45: #{tpu_custom_call.1} parent=1 // pred_fallthru
      _
    // Predicated region
    $region46: #{tpu_custom_call.1} parent=1 // pred_check
      _
    $region47: #{tpu_custom_call.1} parent=1 // pred_check_branch
      %119 = sbr.rel (0) target = $region49
    $region48: #{tpu_custom_call.1} parent=1 // pred_region
      %121 = dma.done [#allocation6], 6144
    $region49: #{tpu_custom_call.1} parent=1 // pred_fallthru
      _
    // Predicated region
    $region50: #{tpu_custom_call.1} parent=1 // pred_check
      _
    $region51: #{tpu_custom_call.1} parent=1 // pred_check_branch
      %123 = sbr.rel (0) target = $region53
    $region52: #{tpu_custom_call.1} parent=1 // pred_region
      %125 = dma.done [#allocation9], 96
    $region53: #{tpu_custom_call.1} parent=1 // pred_fallthru
      _
    // Predicated region
    $region54: #{tpu_custom_call.1} parent=1 // pred_check
      _
    $region55: #{tpu_custom_call.1} parent=1 // pred_check_branch
      %127 = sbr.rel (0) target = $region57
    $region56: #{tpu_custom_call.1} parent=1 // pred_region
      %129 = dma.done [#allocation9], 6144
    $region57: #{tpu_custom_call.1} parent=1 // pred_fallthru
      _
    // Predicated region
    $region58: #{tpu_custom_call.1} parent=1 // pred_check
      _
    $region59: #{tpu_custom_call.1} parent=1 // pred_check_branch
      %131 = sbr.rel (0) target = $region61
    $region60: #{tpu_custom_call.1} parent=1 // pred_region
      %133 = dma.done [#allocation12], 16
    $region61: #{tpu_custom_call.1} parent=1 // pred_fallthru
      _
    // Predicated region
    $region62: #{tpu_custom_call.1} parent=1 // pred_check
      _
    $region63: #{tpu_custom_call.1} parent=1 // pred_check_branch
      %135 = sbr.rel (0) target = $region65
    $region64: #{tpu_custom_call.1} parent=1 // pred_region
      %137 = dma.done [#allocation12], 6144
    $region65: #{tpu_custom_call.1} parent=1 // pred_fallthru
      _
    %v138 = vld [vmem:[#allocation2] sm:$0xff]
    %v139 = vld [vmem:[#allocation2 + $0x8] sm:$0xff]
    %v140 = vld [vmem:[#allocation2 + $0x10] sm:$0xff]
    %v141 = vld [vmem:[#allocation2 + $0x18] sm:$0xff]
    %v142 = vld [vmem:[#allocation2 + $0x20] sm:$0xff]
    %v143 = vld [vmem:[#allocation2 + $0x28] sm:$0xff]
    %v144 = vld [vmem:[#allocation2 + $0x30] sm:$0xff]
    %v145 = vld [vmem:[#allocation2 + $0x38] sm:$0xff]
    %v146 = vld [vmem:[#allocation2 + $0x40] sm:$0xff]
    %v147 = vld [vmem:[#allocation2 + $0x48] sm:$0xff]
    %v148 = vld [vmem:[#allocation2 + $0x50] sm:$0xff]
    %v149 = vld [vmem:[#allocation2 + $0x58] sm:$0xff]
    %v150 = vpack.c.bf16 %v144, %v138
    %v151 = vpack.c.bf16 %v145, %v139
    %v152 = vpack.c.bf16 %v146, %v140
    %v153 = vpack.c.bf16 %v147, %v141
    %v154 = vpack.c.bf16 %v148, %v142
    %v155 = vpack.c.bf16 %v149, %v143
    %v156 = vld [vmem:[#allocation5] sm:$0xf]
    %v157 = vld [vmem:[#allocation5 + $0x4] sm:$0xf]
    %v158 = vld [vmem:[#allocation5 + $0x8] sm:$0xf]
    %v159 = vld [vmem:[#allocation5 + $0xc] sm:$0xf]
    %v160 = vld [vmem:[#allocation5 + $0x10] sm:$0xf]
    %v161 = vld [vmem:[#allocation5 + $0x14] sm:$0xf]
    %v162 = vld [vmem:[#allocation5 + $0x18] sm:$0xf]
    %v163 = vld [vmem:[#allocation5 + $0x1c] sm:$0xf]
    %v164 = vld [vmem:[#allocation5 + $0x20] sm:$0xf]
    %v165 = vld [vmem:[#allocation5 + $0x24] sm:$0xf]
    %v166 = vld [vmem:[#allocation5 + $0x28] sm:$0xf]
    %v167 = vld [vmem:[#allocation5 + $0x2c] sm:$0xf]
    %v168 = vld [vmem:[#allocation5 + $0x30] sm:$0xf]
    %v169 = vld [vmem:[#allocation5 + $0x34] sm:$0xf]
    %v170 = vld [vmem:[#allocation5 + $0x38] sm:$0xf]
    %v171 = vld [vmem:[#allocation5 + $0x3c] sm:$0xf]
    %v172 = vld [vmem:[#allocation5 + $0x40] sm:$0xf]
    %v173 = vld [vmem:[#allocation5 + $0x44] sm:$0xf]
    %v174 = vld [vmem:[#allocation5 + $0x48] sm:$0xf]
    %v175 = vld [vmem:[#allocation5 + $0x4c] sm:$0xf]
    %v176 = vld [vmem:[#allocation5 + $0x50] sm:$0xf]
    %v177 = vld [vmem:[#allocation5 + $0x54] sm:$0xf]
    %v178 = vld [vmem:[#allocation5 + $0x58] sm:$0xf]
    %v179 = vld [vmem:[#allocation5 + $0x5c] sm:$0xf]
    %v180 = vld [vmem:[#allocation5 + $0x60] sm:$0xf]
    %v181 = vld [vmem:[#allocation5 + $0x64] sm:$0xf]
    %v182 = vld [vmem:[#allocation5 + $0x68] sm:$0xf]
    %v183 = vld [vmem:[#allocation5 + $0x6c] sm:$0xf]
    %v184 = vld [vmem:[#allocation5 + $0x70] sm:$0xf]
    %v185 = vld [vmem:[#allocation5 + $0x74] sm:$0xf]
    %v186 = vld [vmem:[#allocation5 + $0x78] sm:$0xf]
    %v187 = vld [vmem:[#allocation5 + $0x7c] sm:$0xf]
    %v188 = vld [vmem:[#allocation5 + $0x80] sm:$0xf]
    %v189 = vld [vmem:[#allocation5 + $0x84] sm:$0xf]
    %v190 = vld [vmem:[#allocation5 + $0x88] sm:$0xf]
    %v191 = vld [vmem:[#allocation5 + $0x8c] sm:$0xf]
    %v192 = vld [vmem:[#allocation5 + $0x90] sm:$0xf]
    %v193 = vld [vmem:[#allocation5 + $0x94] sm:$0xf]
    %v194 = vld [vmem:[#allocation5 + $0x98] sm:$0xf]
    %v195 = vld [vmem:[#allocation5 + $0x9c] sm:$0xf]
    %v196 = vld [vmem:[#allocation5 + $0xa0] sm:$0xf]
    %v197 = vld [vmem:[#allocation5 + $0xa4] sm:$0xf]
    %v198 = vld [vmem:[#allocation5 + $0xa8] sm:$0xf]
    %v199 = vld [vmem:[#allocation5 + $0xac] sm:$0xf]
    %v200 = vld [vmem:[#allocation5 + $0xb0] sm:$0xf]
    %v201 = vld [vmem:[#allocation5 + $0xb4] sm:$0xf]
    %v202 = vld [vmem:[#allocation5 + $0xb8] sm:$0xf]
    %v203 = vld [vmem:[#allocation5 + $0xbc] sm:$0xf]
    %v204 = vld [vmem:[#allocation5 + $0xc0] sm:$0xf]
    %v205 = vld [vmem:[#allocation5 + $0xc4] sm:$0xf]
    %v206 = vld [vmem:[#allocation5 + $0xc8] sm:$0xf]
    %v207 = vld [vmem:[#allocation5 + $0xcc] sm:$0xf]
    %v208 = vld [vmem:[#allocation5 + $0xd0] sm:$0xf]
    %v209 = vld [vmem:[#allocation5 + $0xd4] sm:$0xf]
    %v210 = vld [vmem:[#allocation5 + $0xd8] sm:$0xf]
    %v211 = vld [vmem:[#allocation5 + $0xdc] sm:$0xf]
    %v212 = vld [vmem:[#allocation5 + $0xe0] sm:$0xf]
    %v213 = vld [vmem:[#allocation5 + $0xe4] sm:$0xf]
    %v214 = vld [vmem:[#allocation5 + $0xe8] sm:$0xf]
    %v215 = vld [vmem:[#allocation5 + $0xec] sm:$0xf]
    %v216 = vld [vmem:[#allocation5 + $0xf0] sm:$0xf]
    %v217 = vld [vmem:[#allocation5 + $0xf4] sm:$0xf]
    %v218 = vld [vmem:[#allocation5 + $0xf8] sm:$0xf]
    %v219 = vld [vmem:[#allocation5 + $0xfc] sm:$0xf]
    %v220 = vld [vmem:[#allocation5 + $0x100] sm:$0xf]
    %v221 = vld [vmem:[#allocation5 + $0x104] sm:$0xf]
    %v222 = vld [vmem:[#allocation5 + $0x108] sm:$0xf]
    %v223 = vld [vmem:[#allocation5 + $0x10c] sm:$0xf]
    %v224 = vld [vmem:[#allocation5 + $0x110] sm:$0xf]
    %v225 = vld [vmem:[#allocation5 + $0x114] sm:$0xf]
    %v226 = vld [vmem:[#allocation5 + $0x118] sm:$0xf]
    %v227 = vld [vmem:[#allocation5 + $0x11c] sm:$0xf]
    %v228 = vld [vmem:[#allocation5 + $0x120] sm:$0xf]
    %v229 = vld [vmem:[#allocation5 + $0x124] sm:$0xf]
    %v230 = vld [vmem:[#allocation5 + $0x128] sm:$0xf]
    %v231 = vld [vmem:[#allocation5 + $0x12c] sm:$0xf]
    %v232 = vld [vmem:[#allocation5 + $0x130] sm:$0xf]
    %v233 = vld [vmem:[#allocation5 + $0x134] sm:$0xf]
    %v234 = vld [vmem:[#allocation5 + $0x138] sm:$0xf]
    %v235 = vld [vmem:[#allocation5 + $0x13c] sm:$0xf]
    %v236 = vld [vmem:[#allocation5 + $0x140] sm:$0xf]
    %v237 = vld [vmem:[#allocation5 + $0x144] sm:$0xf]
    %v238 = vld [vmem:[#allocation5 + $0x148] sm:$0xf]
    %v239 = vld [vmem:[#allocation5 + $0x14c] sm:$0xf]
    %v240 = vld [vmem:[#allocation5 + $0x150] sm:$0xf]
    %v241 = vld [vmem:[#allocation5 + $0x154] sm:$0xf]
    %v242 = vld [vmem:[#allocation5 + $0x158] sm:$0xf]
    %v243 = vld [vmem:[#allocation5 + $0x15c] sm:$0xf]
    %v244 = vld [vmem:[#allocation5 + $0x160] sm:$0xf]
    %v245 = vld [vmem:[#allocation5 + $0x164] sm:$0xf]
    %v246 = vld [vmem:[#allocation5 + $0x168] sm:$0xf]
    %v247 = vld [vmem:[#allocation5 + $0x16c] sm:$0xf]
    %v248 = vld [vmem:[#allocation5 + $0x170] sm:$0xf]
    %v249 = vld [vmem:[#allocation5 + $0x174] sm:$0xf]
    %v250 = vld [vmem:[#allocation5 + $0x178] sm:$0xf]
    %v251 = vld [vmem:[#allocation5 + $0x17c] sm:$0xf]
    %v252 = vld [vmem:[%s2] sm:$0x1]
    %v254 = vperm.slane %v252, 0
    %v352 = vunpack.c.l.b16 %v156
    %v353 = vunpack.c.l.b16 %v157
    %v354 = vunpack.c.l.b16 %v158
    %v355 = vunpack.c.l.b16 %v159
    %v356 = vunpack.c.l.b16 %v160
    %v357 = vunpack.c.l.b16 %v161
    %v358 = vunpack.c.l.b16 %v162
    %v359 = vunpack.c.l.b16 %v163
    %v360 = vunpack.c.l.b16 %v164
    %v361 = vunpack.c.l.b16 %v165
    %v362 = vunpack.c.l.b16 %v166
    %v363 = vunpack.c.l.b16 %v167
    %v364 = vunpack.c.l.b16 %v168
    %v365 = vunpack.c.l.b16 %v169
    %v366 = vunpack.c.l.b16 %v170
    %v367 = vunpack.c.l.b16 %v171
    %v368 = vunpack.c.l.b16 %v172
    %v369 = vunpack.c.l.b16 %v173
    %v370 = vunpack.c.l.b16 %v174
    %v371 = vunpack.c.l.b16 %v175
    %v372 = vunpack.c.l.b16 %v176
    %v373 = vunpack.c.l.b16 %v177
    %v374 = vunpack.c.l.b16 %v178
    %v375 = vunpack.c.l.b16 %v179
    %v376 = vunpack.c.l.b16 %v180
    %v377 = vunpack.c.l.b16 %v181
    %v378 = vunpack.c.l.b16 %v182
    %v379 = vunpack.c.l.b16 %v183
    %v380 = vunpack.c.l.b16 %v184
    %v381 = vunpack.c.l.b16 %v185
    %v382 = vunpack.c.l.b16 %v186
    %v383 = vunpack.c.l.b16 %v187
    %v384 = vunpack.c.l.b16 %v188
    %v385 = vunpack.c.l.b16 %v189
    %v386 = vunpack.c.l.b16 %v190
    %v387 = vunpack.c.l.b16 %v191
    %v388 = vunpack.c.l.b16 %v192
    %v389 = vunpack.c.l.b16 %v193
    %v390 = vunpack.c.l.b16 %v194
    %v391 = vunpack.c.l.b16 %v195
    %v392 = vunpack.c.l.b16 %v196
    %v393 = vunpack.c.l.b16 %v197
    %v394 = vunpack.c.l.b16 %v198
    %v395 = vunpack.c.l.b16 %v199
    %v396 = vunpack.c.l.b16 %v200
    %v397 = vunpack.c.l.b16 %v201
    %v398 = vunpack.c.l.b16 %v202
    %v399 = vunpack.c.l.b16 %v203
    %v400 = vunpack.c.l.b16 %v204
    %v401 = vunpack.c.l.b16 %v205
    %v402 = vunpack.c.l.b16 %v206
    %v403 = vunpack.c.l.b16 %v207
    %v404 = vunpack.c.l.b16 %v208
    %v405 = vunpack.c.l.b16 %v209
    %v406 = vunpack.c.l.b16 %v210
    %v407 = vunpack.c.l.b16 %v211
    %v408 = vunpack.c.l.b16 %v212
    %v409 = vunpack.c.l.b16 %v213
    %v410 = vunpack.c.l.b16 %v214
    %v411 = vunpack.c.l.b16 %v215
    %v412 = vunpack.c.l.b16 %v216
    %v413 = vunpack.c.l.b16 %v217
    %v414 = vunpack.c.l.b16 %v218
    %v415 = vunpack.c.l.b16 %v219
    %v416 = vunpack.c.l.b16 %v220
    %v417 = vunpack.c.l.b16 %v221
    %v418 = vunpack.c.l.b16 %v222
    %v419 = vunpack.c.l.b16 %v223
    %v420 = vunpack.c.l.b16 %v224
    %v421 = vunpack.c.l.b16 %v225
    %v422 = vunpack.c.l.b16 %v226
    %v423 = vunpack.c.l.b16 %v227
    %v424 = vunpack.c.l.b16 %v228
    %v425 = vunpack.c.l.b16 %v229
    %v426 = vunpack.c.l.b16 %v230
    %v427 = vunpack.c.l.b16 %v231
    %v428 = vunpack.c.l.b16 %v232
    %v429 = vunpack.c.l.b16 %v233
    %v430 = vunpack.c.l.b16 %v234
    %v431 = vunpack.c.l.b16 %v235
    %v432 = vunpack.c.l.b16 %v236
    %v433 = vunpack.c.l.b16 %v237
    %v434 = vunpack.c.l.b16 %v238
    %v435 = vunpack.c.l.b16 %v239
    %v436 = vunpack.c.l.b16 %v240
    %v437 = vunpack.c.l.b16 %v241
    %v438 = vunpack.c.l.b16 %v242
    %v439 = vunpack.c.l.b16 %v243
    %v440 = vunpack.c.l.b16 %v244
    %v441 = vunpack.c.l.b16 %v245
    %v442 = vunpack.c.l.b16 %v246
    %v443 = vunpack.c.l.b16 %v247
    %v444 = vunpack.c.l.b16 %v248
    %v445 = vunpack.c.l.b16 %v249
    %v446 = vunpack.c.l.b16 %v250
    %v447 = vunpack.c.l.b16 %v251
    %v448 = vpack.c.b16 %v353, %v352
    %v449 = vpack.c.b16 %v355, %v354
    %v450 = vpack.c.b16 %v357, %v356
    %v451 = vpack.c.b16 %v359, %v358
    %v452 = vpack.c.b16 %v361, %v360
    %v453 = vpack.c.b16 %v363, %v362
    %v454 = vpack.c.b16 %v365, %v364
    %v455 = vpack.c.b16 %v367, %v366
    %v456 = vpack.c.b16 %v369, %v368
    %v457 = vpack.c.b16 %v371, %v370
    %v458 = vpack.c.b16 %v373, %v372
    %v459 = vpack.c.b16 %v375, %v374
    %v460 = vpack.c.b16 %v377, %v376
    %v461 = vpack.c.b16 %v379, %v378
    %v462 = vpack.c.b16 %v381, %v380
    %v463 = vpack.c.b16 %v383, %v382
    %v464 = vpack.c.b16 %v385, %v384
    %v465 = vpack.c.b16 %v387, %v386
    %v466 = vpack.c.b16 %v389, %v388
    %v467 = vpack.c.b16 %v391, %v390
    %v468 = vpack.c.b16 %v393, %v392
    %v469 = vpack.c.b16 %v395, %v394
    %v470 = vpack.c.b16 %v397, %v396
    %v471 = vpack.c.b16 %v399, %v398
    %v472 = vpack.c.b16 %v401, %v400
    %v473 = vpack.c.b16 %v403, %v402
    %v474 = vpack.c.b16 %v405, %v404
    %v475 = vpack.c.b16 %v407, %v406
    %v476 = vpack.c.b16 %v409, %v408
    %v477 = vpack.c.b16 %v411, %v410
    %v478 = vpack.c.b16 %v413, %v412
    %v479 = vpack.c.b16 %v415, %v414
    %v480 = vpack.c.b16 %v417, %v416
    %v481 = vpack.c.b16 %v419, %v418
    %v482 = vpack.c.b16 %v421, %v420
    %v483 = vpack.c.b16 %v423, %v422
    %v484 = vpack.c.b16 %v425, %v424
    %v485 = vpack.c.b16 %v427, %v426
    %v486 = vpack.c.b16 %v429, %v428
    %v487 = vpack.c.b16 %v431, %v430
    %v488 = vpack.c.b16 %v433, %v432
    %v489 = vpack.c.b16 %v435, %v434
    %v490 = vpack.c.b16 %v437, %v436
    %v491 = vpack.c.b16 %v439, %v438
    %v492 = vpack.c.b16 %v441, %v440
    %v493 = vpack.c.b16 %v443, %v442
    %v494 = vpack.c.b16 %v445, %v444
    %v495 = vpack.c.b16 %v447, %v446
    %544 = vmatpush.bf16.msra.mxu0 %v455
    %545 = vmatpush.bf16.msra.mxu0 %v454
    %546 = vmatpush.bf16.msra.mxu0 %v453
    %547 = vmatpush.bf16.msra.mxu0 %v452
    %548 = vmatpush.bf16.msra.mxu0 %v451
    %549 = vmatpush.bf16.msra.mxu0 %v450
    %550 = vmatpush.bf16.msra.mxu0 %v449
    %551 = vmatpush.bf16.msra.mxu0 %v448
    %552 = vmatmul.bf16.gmra.mxu0 %v150
    %v553 = vpop.f32.mrf.mxu0
    %v554 = vadd.f32 %v254, %v553
    %v555 = vpop.f32.mrf.mxu0
    %v556 = vadd.f32 %v254, %v555
    %557 = vdwg.mxu0
    %558 = vmatpush.bf16.msra.mxu0 %v463
    %559 = vmatpush.bf16.msra.mxu0 %v462
    %560 = vmatpush.bf16.msra.mxu0 %v461
    %561 = vmatpush.bf16.msra.mxu0 %v460
    %562 = vmatpush.bf16.msra.mxu0 %v459
    %563 = vmatpush.bf16.msra.mxu0 %v458
    %564 = vmatpush.bf16.msra.mxu0 %v457
    %565 = vmatpush.bf16.msra.mxu0 %v456
    %566 = vmatmul.bf16.gmra.mxu0 %v151
    %v567 = vpop.f32.mrf.mxu0
    %v568 = vadd.f32 %v554, %v567
    %v569 = vpop.f32.mrf.mxu0
    %v570 = vadd.f32 %v556, %v569
    %571 = vdwg.mxu0
    %572 = vmatpush.bf16.msra.mxu0 %v471
    %573 = vmatpush.bf16.msra.mxu0 %v470
    %574 = vmatpush.bf16.msra.mxu0 %v469
    %575 = vmatpush.bf16.msra.mxu0 %v468
    %576 = vmatpush.bf16.msra.mxu0 %v467
    %577 = vmatpush.bf16.msra.mxu0 %v466
    %578 = vmatpush.bf16.msra.mxu0 %v465
    %579 = vmatpush.bf16.msra.mxu0 %v464
    %580 = vmatmul.bf16.gmra.mxu0 %v152
    %v581 = vpop.f32.mrf.mxu0
    %v582 = vadd.f32 %v568, %v581
    %v583 = vpop.f32.mrf.mxu0
    %v584 = vadd.f32 %v570, %v583
    %585 = vdwg.mxu0
    %586 = vmatpush.bf16.msra.mxu0 %v479
    %587 = vmatpush.bf16.msra.mxu0 %v478
    %588 = vmatpush.bf16.msra.mxu0 %v477
    %589 = vmatpush.bf16.msra.mxu0 %v476
    %590 = vmatpush.bf16.msra.mxu0 %v475
    %591 = vmatpush.bf16.msra.mxu0 %v474
    %592 = vmatpush.bf16.msra.mxu0 %v473
    %593 = vmatpush.bf16.msra.mxu0 %v472
    %594 = vmatmul.bf16.gmra.mxu0 %v153
    %v595 = vpop.f32.mrf.mxu0
    %v596 = vadd.f32 %v582, %v595
    %v597 = vpop.f32.mrf.mxu0
    %v598 = vadd.f32 %v584, %v597
    %599 = vdwg.mxu0
    %600 = vmatpush.bf16.msra.mxu0 %v487
    %601 = vmatpush.bf16.msra.mxu0 %v486
    %602 = vmatpush.bf16.msra.mxu0 %v485
    %603 = vmatpush.bf16.msra.mxu0 %v484
    %604 = vmatpush.bf16.msra.mxu0 %v483
    %605 = vmatpush.bf16.msra.mxu0 %v482
    %606 = vmatpush.bf16.msra.mxu0 %v481
    %607 = vmatpush.bf16.msra.mxu0 %v480
    %608 = vmatmul.bf16.gmra.mxu0 %v154
    %v609 = vpop.f32.mrf.mxu0
    %v610 = vadd.f32 %v596, %v609
    %v611 = vpop.f32.mrf.mxu0
    %v612 = vadd.f32 %v598, %v611
    %613 = vdwg.mxu0
    %614 = vmatpush.bf16.msra.mxu0 %v495
    %615 = vmatpush.bf16.msra.mxu0 %v494
    %616 = vmatpush.bf16.msra.mxu0 %v493
    %617 = vmatpush.bf16.msra.mxu0 %v492
    %618 = vmatpush.bf16.msra.mxu0 %v491
    %619 = vmatpush.bf16.msra.mxu0 %v490
    %620 = vmatpush.bf16.msra.mxu0 %v489
    %621 = vmatpush.bf16.msra.mxu0 %v488
    %622 = vmatmul.bf16.gmra.mxu0 %v155
    %v623 = vpop.f32.mrf.mxu0
    %v624 = vadd.f32 %v610, %v623
    %v625 = vpop.f32.mrf.mxu0
    %v626 = vadd.f32 %v612, %v625
    %627 = vdwg.mxu0
    %v628 = vtanh.pop %v624
    %v629 = vtanh.pop %v626
    %v630 = vpack.c.bf16 %v629, %v628
    %v631 = vld [vmem:[#allocation7] sm:$0xff]
    %v632 = vld [vmem:[#allocation7 + $0x8] sm:$0xff]
    %v633 = vld [vmem:[#allocation7 + $0x10] sm:$0xff]
    %v634 = vld [vmem:[#allocation7 + $0x18] sm:$0xff]
    %v635 = vld [vmem:[#allocation7 + $0x20] sm:$0xff]
    %v636 = vld [vmem:[#allocation7 + $0x28] sm:$0xff]
    %v637 = vld [vmem:[#allocation7 + $0x30] sm:$0xff]
    %v638 = vld [vmem:[#allocation7 + $0x38] sm:$0xff]
    %v639 = vld [vmem:[#allocation7 + $0x40] sm:$0xff]
    %v640 = vld [vmem:[#allocation7 + $0x48] sm:$0xff]
    %v641 = vld [vmem:[#allocation7 + $0x50] sm:$0xff]
    %v642 = vld [vmem:[#allocation7 + $0x58] sm:$0xff]
    %v643 = vld [vmem:[#allocation7 + $0x60] sm:$0xff]
    %v644 = vld [vmem:[#allocation7 + $0x68] sm:$0xff]
    %v645 = vld [vmem:[#allocation7 + $0x70] sm:$0xff]
    %v646 = vld [vmem:[#allocation7 + $0x78] sm:$0xff]
    %v647 = vld [vmem:[#allocation7 + $0x80] sm:$0xff]
    %v648 = vld [vmem:[#allocation7 + $0x88] sm:$0xff]
    %v649 = vld [vmem:[#allocation7 + $0x90] sm:$0xff]
    %v650 = vld [vmem:[#allocation7 + $0x98] sm:$0xff]
    %v651 = vld [vmem:[#allocation7 + $0xa0] sm:$0xff]
    %v652 = vld [vmem:[#allocation7 + $0xa8] sm:$0xff]
    %v653 = vld [vmem:[#allocation7 + $0xb0] sm:$0xff]
    %v654 = vld [vmem:[#allocation7 + $0xb8] sm:$0xff]
    %v655 = vld [vmem:[#allocation7 + $0xc0] sm:$0xff]
    %v656 = vld [vmem:[#allocation7 + $0xc8] sm:$0xff]
    %v657 = vld [vmem:[#allocation7 + $0xd0] sm:$0xff]
    %v658 = vld [vmem:[#allocation7 + $0xd8] sm:$0xff]
    %v659 = vld [vmem:[#allocation7 + $0xe0] sm:$0xff]
    %v660 = vld [vmem:[#allocation7 + $0xe8] sm:$0xff]
    %v661 = vld [vmem:[#allocation7 + $0xf0] sm:$0xff]
    %v662 = vld [vmem:[#allocation7 + $0xf8] sm:$0xff]
    %v663 = vld [vmem:[#allocation7 + $0x100] sm:$0xff]
    %v664 = vld [vmem:[#allocation7 + $0x108] sm:$0xff]
    %v665 = vld [vmem:[#allocation7 + $0x110] sm:$0xff]
    %v666 = vld [vmem:[#allocation7 + $0x118] sm:$0xff]
    %v667 = vld [vmem:[#allocation7 + $0x120] sm:$0xff]
    %v668 = vld [vmem:[#allocation7 + $0x128] sm:$0xff]
    %v669 = vld [vmem:[#allocation7 + $0x130] sm:$0xff]
    %v670 = vld [vmem:[#allocation7 + $0x138] sm:$0xff]
    %v671 = vld [vmem:[#allocation7 + $0x140] sm:$0xff]
    %v672 = vld [vmem:[#allocation7 + $0x148] sm:$0xff]
    %v673 = vld [vmem:[#allocation7 + $0x150] sm:$0xff]
    %v674 = vld [vmem:[#allocation7 + $0x158] sm:$0xff]
    %v675 = vld [vmem:[#allocation7 + $0x160] sm:$0xff]
    %v676 = vld [vmem:[#allocation7 + $0x168] sm:$0xff]
    %v677 = vld [vmem:[#allocation7 + $0x170] sm:$0xff]
    %v678 = vld [vmem:[#allocation7 + $0x178] sm:$0xff]
    %v679 = vld [vmem:[#allocation8] sm:$0x3f]
    %v681 = vperm.slane %v679, 0
    %v682 = vperm.slane %v679, 1
    %v683 = vperm.slane %v679, 2
    %v684 = vperm.slane %v679, 3
    %v685 = vperm.slane %v679, 4
    %v686 = vperm.slane %v679, 5
    %v741 = vunpack.c.l.b16 %v631
    %v742 = vunpack.c.h.b16 %v631
    %v743 = vunpack.c.l.b16 %v632
    %v744 = vunpack.c.h.b16 %v632
    %v745 = vunpack.c.l.b16 %v633
    %v746 = vunpack.c.h.b16 %v633
    %v747 = vunpack.c.l.b16 %v634
    %v748 = vunpack.c.h.b16 %v634
    %v749 = vunpack.c.l.b16 %v635
    %v750 = vunpack.c.h.b16 %v635
    %v751 = vunpack.c.l.b16 %v636
    %v752 = vunpack.c.h.b16 %v636
    %v753 = vunpack.c.l.b16 %v637
    %v754 = vunpack.c.h.b16 %v637
    %v755 = vunpack.c.l.b16 %v638
    %v756 = vunpack.c.h.b16 %v638
    %v757 = vunpack.c.l.b16 %v639
    %v758 = vunpack.c.h.b16 %v639
    %v759 = vunpack.c.l.b16 %v640
    %v760 = vunpack.c.h.b16 %v640
    %v761 = vunpack.c.l.b16 %v641
    %v762 = vunpack.c.h.b16 %v641
    %v763 = vunpack.c.l.b16 %v642
    %v764 = vunpack.c.h.b16 %v642
    %v765 = vunpack.c.l.b16 %v643
    %v766 = vunpack.c.h.b16 %v643
    %v767 = vunpack.c.l.b16 %v644
    %v768 = vunpack.c.h.b16 %v644
    %v769 = vunpack.c.l.b16 %v645
    %v770 = vunpack.c.h.b16 %v645
    %v771 = vunpack.c.l.b16 %v646
    %v772 = vunpack.c.h.b16 %v646
    %v773 = vunpack.c.l.b16 %v647
    %v774 = vunpack.c.h.b16 %v647
    %v775 = vunpack.c.l.b16 %v648
    %v776 = vunpack.c.h.b16 %v648
    %v777 = vunpack.c.l.b16 %v649
    %v778 = vunpack.c.h.b16 %v649
    %v779 = vunpack.c.l.b16 %v650
    %v780 = vunpack.c.h.b16 %v650
    %v781 = vunpack.c.l.b16 %v651
    %v782 = vunpack.c.h.b16 %v651
    %v783 = vunpack.c.l.b16 %v652
    %v784 = vunpack.c.h.b16 %v652
    %v785 = vunpack.c.l.b16 %v653
    %v786 = vunpack.c.h.b16 %v653
    %v787 = vunpack.c.l.b16 %v654
    %v788 = vunpack.c.h.b16 %v654
    %v789 = vunpack.c.l.b16 %v655
    %v790 = vunpack.c.h.b16 %v655
    %v791 = vunpack.c.l.b16 %v656
    %v792 = vunpack.c.h.b16 %v656
    %v793 = vunpack.c.l.b16 %v657
    %v794 = vunpack.c.h.b16 %v657
    %v795 = vunpack.c.l.b16 %v658
    %v796 = vunpack.c.h.b16 %v658
    %v797 = vunpack.c.l.b16 %v659
    %v798 = vunpack.c.h.b16 %v659
    %v799 = vunpack.c.l.b16 %v660
    %v800 = vunpack.c.h.b16 %v660
    %v801 = vunpack.c.l.b16 %v661
    %v802 = vunpack.c.h.b16 %v661
    %v803 = vunpack.c.l.b16 %v662
    %v804 = vunpack.c.h.b16 %v662
    %v805 = vunpack.c.l.b16 %v663
    %v806 = vunpack.c.h.b16 %v663
    %v807 = vunpack.c.l.b16 %v664
    %v808 = vunpack.c.h.b16 %v664
    %v809 = vunpack.c.l.b16 %v665
    %v810 = vunpack.c.h.b16 %v665
    %v811 = vunpack.c.l.b16 %v666
    %v812 = vunpack.c.h.b16 %v666
    %v813 = vunpack.c.l.b16 %v667
    %v814 = vunpack.c.h.b16 %v667
    %v815 = vunpack.c.l.b16 %v668
    %v816 = vunpack.c.h.b16 %v668
    %v817 = vunpack.c.l.b16 %v669
    %v818 = vunpack.c.h.b16 %v669
    %v819 = vunpack.c.l.b16 %v670
    %v820 = vunpack.c.h.b16 %v670
    %v821 = vunpack.c.l.b16 %v671
    %v822 = vunpack.c.h.b16 %v671
    %v823 = vunpack.c.l.b16 %v672
    %v824 = vunpack.c.h.b16 %v672
    %v825 = vunpack.c.l.b16 %v673
    %v826 = vunpack.c.h.b16 %v673
    %v827 = vunpack.c.l.b16 %v674
    %v828 = vunpack.c.h.b16 %v674
    %v829 = vunpack.c.l.b16 %v675
    %v830 = vunpack.c.h.b16 %v675
    %v831 = vunpack.c.l.b16 %v676
    %v832 = vunpack.c.h.b16 %v676
    %v833 = vunpack.c.l.b16 %v677
    %v834 = vunpack.c.h.b16 %v677
    %v835 = vunpack.c.l.b16 %v678
    %v836 = vunpack.c.h.b16 %v678
    %v837 = vpack.c.b16 %v747, %v741
    %v838 = vpack.c.b16 %v748, %v742
    %v839 = vpack.c.b16 %v749, %v743
    %v840 = vpack.c.b16 %v750, %v744
    %v841 = vpack.c.b16 %v751, %v745
    %v842 = vpack.c.b16 %v752, %v746
    %v843 = vpack.c.b16 %v759, %v753
    %v844 = vpack.c.b16 %v760, %v754
    %v845 = vpack.c.b16 %v761, %v755
    %v846 = vpack.c.b16 %v762, %v756
    %v847 = vpack.c.b16 %v763, %v757
    %v848 = vpack.c.b16 %v764, %v758
    %v849 = vpack.c.b16 %v771, %v765
    %v850 = vpack.c.b16 %v772, %v766
    %v851 = vpack.c.b16 %v773, %v767
    %v852 = vpack.c.b16 %v774, %v768
    %v853 = vpack.c.b16 %v775, %v769
    %v854 = vpack.c.b16 %v776, %v770
    %v855 = vpack.c.b16 %v783, %v777
    %v856 = vpack.c.b16 %v784, %v778
    %v857 = vpack.c.b16 %v785, %v779
    %v858 = vpack.c.b16 %v786, %v780
    %v859 = vpack.c.b16 %v787, %v781
    %v860 = vpack.c.b16 %v788, %v782
    %v861 = vpack.c.b16 %v795, %v789
    %v862 = vpack.c.b16 %v796, %v790
    %v863 = vpack.c.b16 %v797, %v791
    %v864 = vpack.c.b16 %v798, %v792
    %v865 = vpack.c.b16 %v799, %v793
    %v866 = vpack.c.b16 %v800, %v794
    %v867 = vpack.c.b16 %v807, %v801
    %v868 = vpack.c.b16 %v808, %v802
    %v869 = vpack.c.b16 %v809, %v803
    %v870 = vpack.c.b16 %v810, %v804
    %v871 = vpack.c.b16 %v811, %v805
    %v872 = vpack.c.b16 %v812, %v806
    %v873 = vpack.c.b16 %v819, %v813
    %v874 = vpack.c.b16 %v820, %v814
    %v875 = vpack.c.b16 %v821, %v815
    %v876 = vpack.c.b16 %v822, %v816
    %v877 = vpack.c.b16 %v823, %v817
    %v878 = vpack.c.b16 %v824, %v818
    %v879 = vpack.c.b16 %v831, %v825
    %v880 = vpack.c.b16 %v832, %v826
    %v881 = vpack.c.b16 %v833, %v827
    %v882 = vpack.c.b16 %v834, %v828
    %v883 = vpack.c.b16 %v835, %v829
    %v884 = vpack.c.b16 %v836, %v830
    %933 = vmatpush.bf16.msra.mxu0 %v879
    %934 = vmatpush.bf16.msra.mxu0 %v873
    %935 = vmatpush.bf16.msra.mxu0 %v867
    %936 = vmatpush.bf16.msra.mxu0 %v861
    %937 = vmatpush.bf16.msra.mxu0 %v855
    %938 = vmatpush.bf16.msra.mxu0 %v849
    %939 = vmatpush.bf16.msra.mxu0 %v843
    %940 = vmatpush.bf16.msra.mxu0 %v837
    %941 = vmatmul.bf16.gmra.mxu0 %v630
    %v942 = vpop.f32.mrf.mxu0
    %v943 = vadd.f32 %v681, %v942
    %v944 = vpop.f32.mrf.mxu0
    %v945 = vadd.f32 %v681, %v944
    %946 = vdwg.mxu0
    %947 = vmatpush.bf16.msra.mxu0 %v880
    %948 = vmatpush.bf16.msra.mxu0 %v874
    %949 = vmatpush.bf16.msra.mxu0 %v868
    %950 = vmatpush.bf16.msra.mxu0 %v862
    %951 = vmatpush.bf16.msra.mxu0 %v856
    %952 = vmatpush.bf16.msra.mxu0 %v850
    %953 = vmatpush.bf16.msra.mxu0 %v844
    %954 = vmatpush.bf16.msra.mxu0 %v838
    %955 = vmatmul.bf16.gmra.mxu0 %v630
    %v956 = vpop.f32.mrf.mxu0
    %v957 = vadd.f32 %v682, %v956
    %v958 = vpop.f32.mrf.mxu0
    %v959 = vadd.f32 %v682, %v958
    %960 = vdwg.mxu0
    %961 = vmatpush.bf16.msra.mxu0 %v881
    %962 = vmatpush.bf16.msra.mxu0 %v875
    %963 = vmatpush.bf16.msra.mxu0 %v869
    %964 = vmatpush.bf16.msra.mxu0 %v863
    %965 = vmatpush.bf16.msra.mxu0 %v857
    %966 = vmatpush.bf16.msra.mxu0 %v851
    %967 = vmatpush.bf16.msra.mxu0 %v845
    %968 = vmatpush.bf16.msra.mxu0 %v839
    %969 = vmatmul.bf16.gmra.mxu0 %v630
    %v970 = vpop.f32.mrf.mxu0
    %v971 = vadd.f32 %v683, %v970
    %v972 = vpop.f32.mrf.mxu0
    %v973 = vadd.f32 %v683, %v972
    %974 = vdwg.mxu0
    %975 = vmatpush.bf16.msra.mxu0 %v882
    %976 = vmatpush.bf16.msra.mxu0 %v876
    %977 = vmatpush.bf16.msra.mxu0 %v870
    %978 = vmatpush.bf16.msra.mxu0 %v864
    %979 = vmatpush.bf16.msra.mxu0 %v858
    %980 = vmatpush.bf16.msra.mxu0 %v852
    %981 = vmatpush.bf16.msra.mxu0 %v846
    %982 = vmatpush.bf16.msra.mxu0 %v840
    %983 = vmatmul.bf16.gmra.mxu0 %v630
    %v984 = vpop.f32.mrf.mxu0
    %v985 = vadd.f32 %v684, %v984
    %v986 = vpop.f32.mrf.mxu0
    %v987 = vadd.f32 %v684, %v986
    %988 = vdwg.mxu0
    %989 = vmatpush.bf16.msra.mxu0 %v883
    %990 = vmatpush.bf16.msra.mxu0 %v877
    %991 = vmatpush.bf16.msra.mxu0 %v871
    %992 = vmatpush.bf16.msra.mxu0 %v865
    %993 = vmatpush.bf16.msra.mxu0 %v859
    %994 = vmatpush.bf16.msra.mxu0 %v853
    %995 = vmatpush.bf16.msra.mxu0 %v847
    %996 = vmatpush.bf16.msra.mxu0 %v841
    %997 = vmatmul.bf16.gmra.mxu0 %v630
    %v998 = vpop.f32.mrf.mxu0
    %v999 = vadd.f32 %v685, %v998
    %v1000 = vpop.f32.mrf.mxu0
    %v1001 = vadd.f32 %v685, %v1000
    %1002 = vdwg.mxu0
    %1003 = vmatpush.bf16.msra.mxu0 %v884
    %1004 = vmatpush.bf16.msra.mxu0 %v878
    %1005 = vmatpush.bf16.msra.mxu0 %v872
    %1006 = vmatpush.bf16.msra.mxu0 %v866
    %1007 = vmatpush.bf16.msra.mxu0 %v860
    %1008 = vmatpush.bf16.msra.mxu0 %v854
    %1009 = vmatpush.bf16.msra.mxu0 %v848
    %1010 = vmatpush.bf16.msra.mxu0 %v842
    %1011 = vmatmul.bf16.gmra.mxu0 %v630
    %v1012 = vpop.f32.mrf.mxu0
    %v1013 = vadd.f32 %v686, %v1012
    %v1014 = vpop.f32.mrf.mxu0
    %v1015 = vadd.f32 %v686, %v1014
    %1016 = vdwg.mxu0
    %v1017 = vadd.f32 %v943, %v138
    %v1018 = vadd.f32 %v957, %v139
    %v1019 = vadd.f32 %v971, %v140
    %v1020 = vadd.f32 %v985, %v141
    %v1021 = vadd.f32 %v999, %v142
    %v1022 = vadd.f32 %v1013, %v143
    %v1023 = vadd.f32 %v945, %v144
    %v1024 = vadd.f32 %v959, %v145
    %v1025 = vadd.f32 %v973, %v146
    %v1026 = vadd.f32 %v987, %v147
    %v1027 = vadd.f32 %v1001, %v148
    %v1028 = vadd.f32 %v1015, %v149
    %v1029 = vpack.c.bf16 %v1023, %v1017
    %v1030 = vpack.c.bf16 %v1024, %v1018
    %v1031 = vpack.c.bf16 %v1025, %v1019
    %v1032 = vpack.c.bf16 %v1026, %v1020
    %v1033 = vpack.c.bf16 %v1027, %v1021
    %v1034 = vpack.c.bf16 %v1028, %v1022
    %v1035 = vld [vmem:[#allocation10] sm:$0xf]
    %v1036 = vld [vmem:[#allocation10 + $0x4] sm:$0xf]
    %v1037 = vld [vmem:[#allocation10 + $0x8] sm:$0xf]
    %v1038 = vld [vmem:[#allocation10 + $0xc] sm:$0xf]
    %v1039 = vld [vmem:[#allocation10 + $0x10] sm:$0xf]
    %v1040 = vld [vmem:[#allocation10 + $0x14] sm:$0xf]
    %v1041 = vld [vmem:[#allocation10 + $0x18] sm:$0xf]
    %v1042 = vld [vmem:[#allocation10 + $0x1c] sm:$0xf]
    %v1043 = vld [vmem:[#allocation10 + $0x20] sm:$0xf]
    %v1044 = vld [vmem:[#allocation10 + $0x24] sm:$0xf]
    %v1045 = vld [vmem:[#allocation10 + $0x28] sm:$0xf]
    %v1046 = vld [vmem:[#allocation10 + $0x2c] sm:$0xf]
    %v1047 = vld [vmem:[#allocation10 + $0x30] sm:$0xf]
    %v1048 = vld [vmem:[#allocation10 + $0x34] sm:$0xf]
    %v1049 = vld [vmem:[#allocation10 + $0x38] sm:$0xf]
    %v1050 = vld [vmem:[#allocation10 + $0x3c] sm:$0xf]
    %v1051 = vld [vmem:[#allocation10 + $0x40] sm:$0xf]
    %v1052 = vld [vmem:[#allocation10 + $0x44] sm:$0xf]
    %v1053 = vld [vmem:[#allocation10 + $0x48] sm:$0xf]
    %v1054 = vld [vmem:[#allocation10 + $0x4c] sm:$0xf]
    %v1055 = vld [vmem:[#allocation10 + $0x50] sm:$0xf]
    %v1056 = vld [vmem:[#allocation10 + $0x54] sm:$0xf]
    %v1057 = vld [vmem:[#allocation10 + $0x58] sm:$0xf]
    %v1058 = vld [vmem:[#allocation10 + $0x5c] sm:$0xf]
    %v1059 = vld [vmem:[#allocation10 + $0x60] sm:$0xf]
    %v1060 = vld [vmem:[#allocation10 + $0x64] sm:$0xf]
    %v1061 = vld [vmem:[#allocation10 + $0x68] sm:$0xf]
    %v1062 = vld [vmem:[#allocation10 + $0x6c] sm:$0xf]
    %v1063 = vld [vmem:[#allocation10 + $0x70] sm:$0xf]
    %v1064 = vld [vmem:[#allocation10 + $0x74] sm:$0xf]
    %v1065 = vld [vmem:[#allocation10 + $0x78] sm:$0xf]
    %v1066 = vld [vmem:[#allocation10 + $0x7c] sm:$0xf]
    %v1067 = vld [vmem:[#allocation10 + $0x80] sm:$0xf]
    %v1068 = vld [vmem:[#allocation10 + $0x84] sm:$0xf]
    %v1069 = vld [vmem:[#allocation10 + $0x88] sm:$0xf]
    %v1070 = vld [vmem:[#allocation10 + $0x8c] sm:$0xf]
    %v1071 = vld [vmem:[#allocation10 + $0x90] sm:$0xf]
    %v1072 = vld [vmem:[#allocation10 + $0x94] sm:$0xf]
    %v1073 = vld [vmem:[#allocation10 + $0x98] sm:$0xf]
    %v1074 = vld [vmem:[#allocation10 + $0x9c] sm:$0xf]
    %v1075 = vld [vmem:[#allocation10 + $0xa0] sm:$0xf]
    %v1076 = vld [vmem:[#allocation10 + $0xa4] sm:$0xf]
    %v1077 = vld [vmem:[#allocation10 + $0xa8] sm:$0xf]
    %v1078 = vld [vmem:[#allocation10 + $0xac] sm:$0xf]
    %v1079 = vld [vmem:[#allocation10 + $0xb0] sm:$0xf]
    %v1080 = vld [vmem:[#allocation10 + $0xb4] sm:$0xf]
    %v1081 = vld [vmem:[#allocation10 + $0xb8] sm:$0xf]
    %v1082 = vld [vmem:[#allocation10 + $0xbc] sm:$0xf]
    %v1083 = vld [vmem:[#allocation10 + $0xc0] sm:$0xf]
    %v1084 = vld [vmem:[#allocation10 + $0xc4] sm:$0xf]
    %v1085 = vld [vmem:[#allocation10 + $0xc8] sm:$0xf]
    %v1086 = vld [vmem:[#allocation10 + $0xcc] sm:$0xf]
    %v1087 = vld [vmem:[#allocation10 + $0xd0] sm:$0xf]
    %v1088 = vld [vmem:[#allocation10 + $0xd4] sm:$0xf]
    %v1089 = vld [vmem:[#allocation10 + $0xd8] sm:$0xf]
    %v1090 = vld [vmem:[#allocation10 + $0xdc] sm:$0xf]
    %v1091 = vld [vmem:[#allocation10 + $0xe0] sm:$0xf]
    %v1092 = vld [vmem:[#allocation10 + $0xe4] sm:$0xf]
    %v1093 = vld [vmem:[#allocation10 + $0xe8] sm:$0xf]
    %v1094 = vld [vmem:[#allocation10 + $0xec] sm:$0xf]
    %v1095 = vld [vmem:[#allocation10 + $0xf0] sm:$0xf]
    %v1096 = vld [vmem:[#allocation10 + $0xf4] sm:$0xf]
    %v1097 = vld [vmem:[#allocation10 + $0xf8] sm:$0xf]
    %v1098 = vld [vmem:[#allocation10 + $0xfc] sm:$0xf]
    %v1099 = vld [vmem:[#allocation10 + $0x100] sm:$0xf]
    %v1100 = vld [vmem:[#allocation10 + $0x104] sm:$0xf]
    %v1101 = vld [vmem:[#allocation10 + $0x108] sm:$0xf]
    %v1102 = vld [vmem:[#allocation10 + $0x10c] sm:$0xf]
    %v1103 = vld [vmem:[#allocation10 + $0x110] sm:$0xf]
    %v1104 = vld [vmem:[#allocation10 + $0x114] sm:$0xf]
    %v1105 = vld [vmem:[#allocation10 + $0x118] sm:$0xf]
    %v1106 = vld [vmem:[#allocation10 + $0x11c] sm:$0xf]
    %v1107 = vld [vmem:[#allocation10 + $0x120] sm:$0xf]
    %v1108 = vld [vmem:[#allocation10 + $0x124] sm:$0xf]
    %v1109 = vld [vmem:[#allocation10 + $0x128] sm:$0xf]
    %v1110 = vld [vmem:[#allocation10 + $0x12c] sm:$0xf]
    %v1111 = vld [vmem:[#allocation10 + $0x130] sm:$0xf]
    %v1112 = vld [vmem:[#allocation10 + $0x134] sm:$0xf]
    %v1113 = vld [vmem:[#allocation10 + $0x138] sm:$0xf]
    %v1114 = vld [vmem:[#allocation10 + $0x13c] sm:$0xf]
    %v1115 = vld [vmem:[#allocation10 + $0x140] sm:$0xf]
    %v1116 = vld [vmem:[#allocation10 + $0x144] sm:$0xf]
    %v1117 = vld [vmem:[#allocation10 + $0x148] sm:$0xf]
    %v1118 = vld [vmem:[#allocation10 + $0x14c] sm:$0xf]
    %v1119 = vld [vmem:[#allocation10 + $0x150] sm:$0xf]
    %v1120 = vld [vmem:[#allocation10 + $0x154] sm:$0xf]
    %v1121 = vld [vmem:[#allocation10 + $0x158] sm:$0xf]
    %v1122 = vld [vmem:[#allocation10 + $0x15c] sm:$0xf]
    %v1123 = vld [vmem:[#allocation10 + $0x160] sm:$0xf]
    %v1124 = vld [vmem:[#allocation10 + $0x164] sm:$0xf]
    %v1125 = vld [vmem:[#allocation10 + $0x168] sm:$0xf]
    %v1126 = vld [vmem:[#allocation10 + $0x16c] sm:$0xf]
    %v1127 = vld [vmem:[#allocation10 + $0x170] sm:$0xf]
    %v1128 = vld [vmem:[#allocation10 + $0x174] sm:$0xf]
    %v1129 = vld [vmem:[#allocation10 + $0x178] sm:$0xf]
    %v1130 = vld [vmem:[#allocation10 + $0x17c] sm:$0xf]
    %v1131 = vld [vmem:[#allocation11] sm:$0x1]
    %v1133 = vperm.slane %v1131, 0
    %v1231 = vunpack.c.l.b16 %v1035
    %v1232 = vunpack.c.l.b16 %v1036
    %v1233 = vunpack.c.l.b16 %v1037
    %v1234 = vunpack.c.l.b16 %v1038
    %v1235 = vunpack.c.l.b16 %v1039
    %v1236 = vunpack.c.l.b16 %v1040
    %v1237 = vunpack.c.l.b16 %v1041
    %v1238 = vunpack.c.l.b16 %v1042
    %v1239 = vunpack.c.l.b16 %v1043
    %v1240 = vunpack.c.l.b16 %v1044
    %v1241 = vunpack.c.l.b16 %v1045
    %v1242 = vunpack.c.l.b16 %v1046
    %v1243 = vunpack.c.l.b16 %v1047
    %v1244 = vunpack.c.l.b16 %v1048
    %v1245 = vunpack.c.l.b16 %v1049
    %v1246 = vunpack.c.l.b16 %v1050
    %v1247 = vunpack.c.l.b16 %v1051
    %v1248 = vunpack.c.l.b16 %v1052
    %v1249 = vunpack.c.l.b16 %v1053
    %v1250 = vunpack.c.l.b16 %v1054
    %v1251 = vunpack.c.l.b16 %v1055
    %v1252 = vunpack.c.l.b16 %v1056
    %v1253 = vunpack.c.l.b16 %v1057
    %v1254 = vunpack.c.l.b16 %v1058
    %v1255 = vunpack.c.l.b16 %v1059
    %v1256 = vunpack.c.l.b16 %v1060
    %v1257 = vunpack.c.l.b16 %v1061
    %v1258 = vunpack.c.l.b16 %v1062
    %v1259 = vunpack.c.l.b16 %v1063
    %v1260 = vunpack.c.l.b16 %v1064
    %v1261 = vunpack.c.l.b16 %v1065
    %v1262 = vunpack.c.l.b16 %v1066
    %v1263 = vunpack.c.l.b16 %v1067
    %v1264 = vunpack.c.l.b16 %v1068
    %v1265 = vunpack.c.l.b16 %v1069
    %v1266 = vunpack.c.l.b16 %v1070
    %v1267 = vunpack.c.l.b16 %v1071
    %v1268 = vunpack.c.l.b16 %v1072
    %v1269 = vunpack.c.l.b16 %v1073
    %v1270 = vunpack.c.l.b16 %v1074
    %v1271 = vunpack.c.l.b16 %v1075
    %v1272 = vunpack.c.l.b16 %v1076
    %v1273 = vunpack.c.l.b16 %v1077
    %v1274 = vunpack.c.l.b16 %v1078
    %v1275 = vunpack.c.l.b16 %v1079
    %v1276 = vunpack.c.l.b16 %v1080
    %v1277 = vunpack.c.l.b16 %v1081
    %v1278 = vunpack.c.l.b16 %v1082
    %v1279 = vunpack.c.l.b16 %v1083
    %v1280 = vunpack.c.l.b16 %v1084
    %v1281 = vunpack.c.l.b16 %v1085
    %v1282 = vunpack.c.l.b16 %v1086
    %v1283 = vunpack.c.l.b16 %v1087
    %v1284 = vunpack.c.l.b16 %v1088
    %v1285 = vunpack.c.l.b16 %v1089
    %v1286 = vunpack.c.l.b16 %v1090
    %v1287 = vunpack.c.l.b16 %v1091
    %v1288 = vunpack.c.l.b16 %v1092
    %v1289 = vunpack.c.l.b16 %v1093
    %v1290 = vunpack.c.l.b16 %v1094
    %v1291 = vunpack.c.l.b16 %v1095
    %v1292 = vunpack.c.l.b16 %v1096
    %v1293 = vunpack.c.l.b16 %v1097
    %v1294 = vunpack.c.l.b16 %v1098
    %v1295 = vunpack.c.l.b16 %v1099
    %v1296 = vunpack.c.l.b16 %v1100
    %v1297 = vunpack.c.l.b16 %v1101
    %v1298 = vunpack.c.l.b16 %v1102
    %v1299 = vunpack.c.l.b16 %v1103
    %v1300 = vunpack.c.l.b16 %v1104
    %v1301 = vunpack.c.l.b16 %v1105
    %v1302 = vunpack.c.l.b16 %v1106
    %v1303 = vunpack.c.l.b16 %v1107
    %v1304 = vunpack.c.l.b16 %v1108
    %v1305 = vunpack.c.l.b16 %v1109
    %v1306 = vunpack.c.l.b16 %v1110
    %v1307 = vunpack.c.l.b16 %v1111
    %v1308 = vunpack.c.l.b16 %v1112
    %v1309 = vunpack.c.l.b16 %v1113
    %v1310 = vunpack.c.l.b16 %v1114
    %v1311 = vunpack.c.l.b16 %v1115
    %v1312 = vunpack.c.l.b16 %v1116
    %v1313 = vunpack.c.l.b16 %v1117
    %v1314 = vunpack.c.l.b16 %v1118
    %v1315 = vunpack.c.l.b16 %v1119
    %v1316 = vunpack.c.l.b16 %v1120
    %v1317 = vunpack.c.l.b16 %v1121
    %v1318 = vunpack.c.l.b16 %v1122
    %v1319 = vunpack.c.l.b16 %v1123
    %v1320 = vunpack.c.l.b16 %v1124
    %v1321 = vunpack.c.l.b16 %v1125
    %v1322 = vunpack.c.l.b16 %v1126
    %v1323 = vunpack.c.l.b16 %v1127
    %v1324 = vunpack.c.l.b16 %v1128
    %v1325 = vunpack.c.l.b16 %v1129
    %v1326 = vunpack.c.l.b16 %v1130
    %v1327 = vpack.c.b16 %v1232, %v1231
    %v1328 = vpack.c.b16 %v1234, %v1233
    %v1329 = vpack.c.b16 %v1236, %v1235
    %v1330 = vpack.c.b16 %v1238, %v1237
    %v1331 = vpack.c.b16 %v1240, %v1239
    %v1332 = vpack.c.b16 %v1242, %v1241
    %v1333 = vpack.c.b16 %v1244, %v1243
    %v1334 = vpack.c.b16 %v1246, %v1245
    %v1335 = vpack.c.b16 %v1248, %v1247
    %v1336 = vpack.c.b16 %v1250, %v1249
    %v1337 = vpack.c.b16 %v1252, %v1251
    %v1338 = vpack.c.b16 %v1254, %v1253
    %v1339 = vpack.c.b16 %v1256, %v1255
    %v1340 = vpack.c.b16 %v1258, %v1257
    %v1341 = vpack.c.b16 %v1260, %v1259
    %v1342 = vpack.c.b16 %v1262, %v1261
    %v1343 = vpack.c.b16 %v1264, %v1263
    %v1344 = vpack.c.b16 %v1266, %v1265
    %v1345 = vpack.c.b16 %v1268, %v1267
    %v1346 = vpack.c.b16 %v1270, %v1269
    %v1347 = vpack.c.b16 %v1272, %v1271
    %v1348 = vpack.c.b16 %v1274, %v1273
    %v1349 = vpack.c.b16 %v1276, %v1275
    %v1350 = vpack.c.b16 %v1278, %v1277
    %v1351 = vpack.c.b16 %v1280, %v1279
    %v1352 = vpack.c.b16 %v1282, %v1281
    %v1353 = vpack.c.b16 %v1284, %v1283
    %v1354 = vpack.c.b16 %v1286, %v1285
    %v1355 = vpack.c.b16 %v1288, %v1287
    %v1356 = vpack.c.b16 %v1290, %v1289
    %v1357 = vpack.c.b16 %v1292, %v1291
    %v1358 = vpack.c.b16 %v1294, %v1293
    %v1359 = vpack.c.b16 %v1296, %v1295
    %v1360 = vpack.c.b16 %v1298, %v1297
    %v1361 = vpack.c.b16 %v1300, %v1299
    %v1362 = vpack.c.b16 %v1302, %v1301
    %v1363 = vpack.c.b16 %v1304, %v1303
    %v1364 = vpack.c.b16 %v1306, %v1305
    %v1365 = vpack.c.b16 %v1308, %v1307
    %v1366 = vpack.c.b16 %v1310, %v1309
    %v1367 = vpack.c.b16 %v1312, %v1311
    %v1368 = vpack.c.b16 %v1314, %v1313
    %v1369 = vpack.c.b16 %v1316, %v1315
    %v1370 = vpack.c.b16 %v1318, %v1317
    %v1371 = vpack.c.b16 %v1320, %v1319
    %v1372 = vpack.c.b16 %v1322, %v1321
    %v1373 = vpack.c.b16 %v1324, %v1323
    %v1374 = vpack.c.b16 %v1326, %v1325
    %1423 = vmatpush.bf16.msra.mxu0 %v1334
    %1424 = vmatpush.bf16.msra.mxu0 %v1333
    %1425 = vmatpush.bf16.msra.mxu0 %v1332
    %1426 = vmatpush.bf16.msra.mxu0 %v1331
    %1427 = vmatpush.bf16.msra.mxu0 %v1330
    %1428 = vmatpush.bf16.msra.mxu0 %v1329
    %1429 = vmatpush.bf16.msra.mxu0 %v1328
    %1430 = vmatpush.bf16.msra.mxu0 %v1327
    %1431 = vmatmul.bf16.gmra.mxu0 %v1029
    %v1432 = vpop.f32.mrf.mxu0
    %v1433 = vadd.f32 %v1133, %v1432
    %v1434 = vpop.f32.mrf.mxu0
    %v1435 = vadd.f32 %v1133, %v1434
    %1436 = vdwg.mxu0
    %1437 = vmatpush.bf16.msra.mxu0 %v1342
    %1438 = vmatpush.bf16.msra.mxu0 %v1341
    %1439 = vmatpush.bf16.msra.mxu0 %v1340
    %1440 = vmatpush.bf16.msra.mxu0 %v1339
    %1441 = vmatpush.bf16.msra.mxu0 %v1338
    %1442 = vmatpush.bf16.msra.mxu0 %v1337
    %1443 = vmatpush.bf16.msra.mxu0 %v1336
    %1444 = vmatpush.bf16.msra.mxu0 %v1335
    %1445 = vmatmul.bf16.gmra.mxu0 %v1030
    %v1446 = vpop.f32.mrf.mxu0
    %v1447 = vadd.f32 %v1433, %v1446
    %v1448 = vpop.f32.mrf.mxu0
    %v1449 = vadd.f32 %v1435, %v1448
    %1450 = vdwg.mxu0
    %1451 = vmatpush.bf16.msra.mxu0 %v1350
    %1452 = vmatpush.bf16.msra.mxu0 %v1349
    %1453 = vmatpush.bf16.msra.mxu0 %v1348
    %1454 = vmatpush.bf16.msra.mxu0 %v1347
    %1455 = vmatpush.bf16.msra.mxu0 %v1346
    %1456 = vmatpush.bf16.msra.mxu0 %v1345
    %1457 = vmatpush.bf16.msra.mxu0 %v1344
    %1458 = vmatpush.bf16.msra.mxu0 %v1343
    %1459 = vmatmul.bf16.gmra.mxu0 %v1031
    %v1460 = vpop.f32.mrf.mxu0
    %v1461 = vadd.f32 %v1447, %v1460
    %v1462 = vpop.f32.mrf.mxu0
    %v1463 = vadd.f32 %v1449, %v1462
    %1464 = vdwg.mxu0
    %1465 = vmatpush.bf16.msra.mxu0 %v1358
    %1466 = vmatpush.bf16.msra.mxu0 %v1357
    %1467 = vmatpush.bf16.msra.mxu0 %v1356
    %1468 = vmatpush.bf16.msra.mxu0 %v1355
    %1469 = vmatpush.bf16.msra.mxu0 %v1354
    %1470 = vmatpush.bf16.msra.mxu0 %v1353
    %1471 = vmatpush.bf16.msra.mxu0 %v1352
    %1472 = vmatpush.bf16.msra.mxu0 %v1351
    %1473 = vmatmul.bf16.gmra.mxu0 %v1032
    %v1474 = vpop.f32.mrf.mxu0
    %v1475 = vadd.f32 %v1461, %v1474
    %v1476 = vpop.f32.mrf.mxu0
    %v1477 = vadd.f32 %v1463, %v1476
    %1478 = vdwg.mxu0
    %1479 = vmatpush.bf16.msra.mxu0 %v1366
    %1480 = vmatpush.bf16.msra.mxu0 %v1365
    %1481 = vmatpush.bf16.msra.mxu0 %v1364
    %1482 = vmatpush.bf16.msra.mxu0 %v1363
    %1483 = vmatpush.bf16.msra.mxu0 %v1362
    %1484 = vmatpush.bf16.msra.mxu0 %v1361
    %1485 = vmatpush.bf16.msra.mxu0 %v1360
    %1486 = vmatpush.bf16.msra.mxu0 %v1359
    %1487 = vmatmul.bf16.gmra.mxu0 %v1033
    %v1488 = vpop.f32.mrf.mxu0
    %v1489 = vadd.f32 %v1475, %v1488
    %v1490 = vpop.f32.mrf.mxu0
    %v1491 = vadd.f32 %v1477, %v1490
    %1492 = vdwg.mxu0
    %1493 = vmatpush.bf16.msra.mxu0 %v1374
    %1494 = vmatpush.bf16.msra.mxu0 %v1373
    %1495 = vmatpush.bf16.msra.mxu0 %v1372
    %1496 = vmatpush.bf16.msra.mxu0 %v1371
    %1497 = vmatpush.bf16.msra.mxu0 %v1370
    %1498 = vmatpush.bf16.msra.mxu0 %v1369
    %1499 = vmatpush.bf16.msra.mxu0 %v1368
    %1500 = vmatpush.bf16.msra.mxu0 %v1367
    %1501 = vmatmul.bf16.gmra.mxu0 %v1034
    %v1502 = vpop.f32.mrf.mxu0
    %v1503 = vadd.f32 %v1489, %v1502
    %v1504 = vpop.f32.mrf.mxu0
    %v1505 = vadd.f32 %v1491, %v1504
    %1506 = vdwg.mxu0
    %v1507 = vtanh.pop %v1503
    %v1508 = vtanh.pop %v1505
    %v1509 = vpack.c.bf16 %v1508, %v1507
    %v1510 = vld [vmem:[#allocation13] sm:$0xff]
    %v1511 = vld [vmem:[#allocation13 + $0x8] sm:$0xff]
    %v1512 = vld [vmem:[#allocation13 + $0x10] sm:$0xff]
    %v1513 = vld [vmem:[#allocation13 + $0x18] sm:$0xff]
    %v1514 = vld [vmem:[#allocation13 + $0x20] sm:$0xff]
    %v1515 = vld [vmem:[#allocation13 + $0x28] sm:$0xff]
    %v1516 = vld [vmem:[#allocation13 + $0x30] sm:$0xff]
    %v1517 = vld [vmem:[#allocation13 + $0x38] sm:$0xff]
    %v1518 = vld [vmem:[#allocation13 + $0x40] sm:$0xff]
    %v1519 = vld [vmem:[#allocation13 + $0x48] sm:$0xff]
    %v1520 = vld [vmem:[#allocation13 + $0x50] sm:$0xff]
    %v1521 = vld [vmem:[#allocation13 + $0x58] sm:$0xff]
    %v1522 = vld [vmem:[#allocation13 + $0x60] sm:$0xff]
    %v1523 = vld [vmem:[#allocation13 + $0x68] sm:$0xff]
    %v1524 = vld [vmem:[#allocation13 + $0x70] sm:$0xff]
    %v1525 = vld [vmem:[#allocation13 + $0x78] sm:$0xff]
    %v1526 = vld [vmem:[#allocation13 + $0x80] sm:$0xff]
    %v1527 = vld [vmem:[#allocation13 + $0x88] sm:$0xff]
    %v1528 = vld [vmem:[#allocation13 + $0x90] sm:$0xff]
    %v1529 = vld [vmem:[#allocation13 + $0x98] sm:$0xff]
    %v1530 = vld [vmem:[#allocation13 + $0xa0] sm:$0xff]
    %v1531 = vld [vmem:[#allocation13 + $0xa8] sm:$0xff]
    %v1532 = vld [vmem:[#allocation13 + $0xb0] sm:$0xff]
    %v1533 = vld [vmem:[#allocation13 + $0xb8] sm:$0xff]
    %v1534 = vld [vmem:[#allocation13 + $0xc0] sm:$0xff]
    %v1535 = vld [vmem:[#allocation13 + $0xc8] sm:$0xff]
    %v1536 = vld [vmem:[#allocation13 + $0xd0] sm:$0xff]
    %v1537 = vld [vmem:[#allocation13 + $0xd8] sm:$0xff]
    %v1538 = vld [vmem:[#allocation13 + $0xe0] sm:$0xff]
    %v1539 = vld [vmem:[#allocation13 + $0xe8] sm:$0xff]
    %v1540 = vld [vmem:[#allocation13 + $0xf0] sm:$0xff]
    %v1541 = vld [vmem:[#allocation13 + $0xf8] sm:$0xff]
    %v1542 = vld [vmem:[#allocation13 + $0x100] sm:$0xff]
    %v1543 = vld [vmem:[#allocation13 + $0x108] sm:$0xff]
    %v1544 = vld [vmem:[#allocation13 + $0x110] sm:$0xff]
    %v1545 = vld [vmem:[#allocation13 + $0x118] sm:$0xff]
    %v1546 = vld [vmem:[#allocation13 + $0x120] sm:$0xff]
    %v1547 = vld [vmem:[#allocation13 + $0x128] sm:$0xff]
    %v1548 = vld [vmem:[#allocation13 + $0x130] sm:$0xff]
    %v1549 = vld [vmem:[#allocation13 + $0x138] sm:$0xff]
    %v1550 = vld [vmem:[#allocation13 + $0x140] sm:$0xff]
    %v1551 = vld [vmem:[#allocation13 + $0x148] sm:$0xff]
    %v1552 = vld [vmem:[#allocation13 + $0x150] sm:$0xff]
    %v1553 = vld [vmem:[#allocation13 + $0x158] sm:$0xff]
    %v1554 = vld [vmem:[#allocation13 + $0x160] sm:$0xff]
    %v1555 = vld [vmem:[#allocation13 + $0x168] sm:$0xff]
    %v1556 = vld [vmem:[#allocation13 + $0x170] sm:$0xff]
    %v1557 = vld [vmem:[#allocation13 + $0x178] sm:$0xff]
    %v1558 = vld [vmem:[%s8] sm:$0x3f]
    %v1560 = vperm.slane %v1558, 0
    %v1561 = vperm.slane %v1558, 1
    %v1562 = vperm.slane %v1558, 2
    %v1563 = vperm.slane %v1558, 3
    %v1564 = vperm.slane %v1558, 4
    %v1565 = vperm.slane %v1558, 5
    %v1620 = vunpack.c.l.b16 %v1510
    %v1621 = vunpack.c.h.b16 %v1510
    %v1622 = vunpack.c.l.b16 %v1511
    %v1623 = vunpack.c.h.b16 %v1511
    %v1624 = vunpack.c.l.b16 %v1512
    %v1625 = vunpack.c.h.b16 %v1512
    %v1626 = vunpack.c.l.b16 %v1513
    %v1627 = vunpack.c.h.b16 %v1513
    %v1628 = vunpack.c.l.b16 %v1514
    %v1629 = vunpack.c.h.b16 %v1514
    %v1630 = vunpack.c.l.b16 %v1515
    %v1631 = vunpack.c.h.b16 %v1515
    %v1632 = vunpack.c.l.b16 %v1516
    %v1633 = vunpack.c.h.b16 %v1516
    %v1634 = vunpack.c.l.b16 %v1517
    %v1635 = vunpack.c.h.b16 %v1517
    %v1636 = vunpack.c.l.b16 %v1518
    %v1637 = vunpack.c.h.b16 %v1518
    %v1638 = vunpack.c.l.b16 %v1519
    %v1639 = vunpack.c.h.b16 %v1519
    %v1640 = vunpack.c.l.b16 %v1520
    %v1641 = vunpack.c.h.b16 %v1520
    %v1642 = vunpack.c.l.b16 %v1521
    %v1643 = vunpack.c.h.b16 %v1521
    %v1644 = vunpack.c.l.b16 %v1522
    %v1645 = vunpack.c.h.b16 %v1522
    %v1646 = vunpack.c.l.b16 %v1523
    %v1647 = vunpack.c.h.b16 %v1523
    %v1648 = vunpack.c.l.b16 %v1524
    %v1649 = vunpack.c.h.b16 %v1524
    %v1650 = vunpack.c.l.b16 %v1525
    %v1651 = vunpack.c.h.b16 %v1525
    %v1652 = vunpack.c.l.b16 %v1526
    %v1653 = vunpack.c.h.b16 %v1526
    %v1654 = vunpack.c.l.b16 %v1527
    %v1655 = vunpack.c.h.b16 %v1527
    %v1656 = vunpack.c.l.b16 %v1528
    %v1657 = vunpack.c.h.b16 %v1528
    %v1658 = vunpack.c.l.b16 %v1529
    %v1659 = vunpack.c.h.b16 %v1529
    %v1660 = vunpack.c.l.b16 %v1530
    %v1661 = vunpack.c.h.b16 %v1530
    %v1662 = vunpack.c.l.b16 %v1531
    %v1663 = vunpack.c.h.b16 %v1531
    %v1664 = vunpack.c.l.b16 %v1532
    %v1665 = vunpack.c.h.b16 %v1532
    %v1666 = vunpack.c.l.b16 %v1533
    %v1667 = vunpack.c.h.b16 %v1533
    %v1668 = vunpack.c.l.b16 %v1534
    %v1669 = vunpack.c.h.b16 %v1534
    %v1670 = vunpack.c.l.b16 %v1535
    %v1671 = vunpack.c.h.b16 %v1535
    %v1672 = vunpack.c.l.b16 %v1536
    %v1673 = vunpack.c.h.b16 %v1536
    %v1674 = vunpack.c.l.b16 %v1537
    %v1675 = vunpack.c.h.b16 %v1537
    %v1676 = vunpack.c.l.b16 %v1538
    %v1677 = vunpack.c.h.b16 %v1538
    %v1678 = vunpack.c.l.b16 %v1539
    %v1679 = vunpack.c.h.b16 %v1539
    %v1680 = vunpack.c.l.b16 %v1540
    %v1681 = vunpack.c.h.b16 %v1540
    %v1682 = vunpack.c.l.b16 %v1541
    %v1683 = vunpack.c.h.b16 %v1541
    %v1684 = vunpack.c.l.b16 %v1542
    %v1685 = vunpack.c.h.b16 %v1542
    %v1686 = vunpack.c.l.b16 %v1543
    %v1687 = vunpack.c.h.b16 %v1543
    %v1688 = vunpack.c.l.b16 %v1544
    %v1689 = vunpack.c.h.b16 %v1544
    %v1690 = vunpack.c.l.b16 %v1545
    %v1691 = vunpack.c.h.b16 %v1545
    %v1692 = vunpack.c.l.b16 %v1546
    %v1693 = vunpack.c.h.b16 %v1546
    %v1694 = vunpack.c.l.b16 %v1547
    %v1695 = vunpack.c.h.b16 %v1547
    %v1696 = vunpack.c.l.b16 %v1548
    %v1697 = vunpack.c.h.b16 %v1548
    %v1698 = vunpack.c.l.b16 %v1549
    %v1699 = vunpack.c.h.b16 %v1549
    %v1700 = vunpack.c.l.b16 %v1550
    %v1701 = vunpack.c.h.b16 %v1550
    %v1702 = vunpack.c.l.b16 %v1551
    %v1703 = vunpack.c.h.b16 %v1551
    %v1704 = vunpack.c.l.b16 %v1552
    %v1705 = vunpack.c.h.b16 %v1552
    %v1706 = vunpack.c.l.b16 %v1553
    %v1707 = vunpack.c.h.b16 %v1553
    %v1708 = vunpack.c.l.b16 %v1554
    %v1709 = vunpack.c.h.b16 %v1554
    %v1710 = vunpack.c.l.b16 %v1555
    %v1711 = vunpack.c.h.b16 %v1555
    %v1712 = vunpack.c.l.b16 %v1556
    %v1713 = vunpack.c.h.b16 %v1556
    %v1714 = vunpack.c.l.b16 %v1557
    %v1715 = vunpack.c.h.b16 %v1557
    %v1716 = vpack.c.b16 %v1626, %v1620
    %v1717 = vpack.c.b16 %v1627, %v1621
    %v1718 = vpack.c.b16 %v1628, %v1622
    %v1719 = vpack.c.b16 %v1629, %v1623
    %v1720 = vpack.c.b16 %v1630, %v1624
    %v1721 = vpack.c.b16 %v1631, %v1625
    %v1722 = vpack.c.b16 %v1638, %v1632
    %v1723 = vpack.c.b16 %v1639, %v1633
    %v1724 = vpack.c.b16 %v1640, %v1634
    %v1725 = vpack.c.b16 %v1641, %v1635
    %v1726 = vpack.c.b16 %v1642, %v1636
    %v1727 = vpack.c.b16 %v1643, %v1637
    %v1728 = vpack.c.b16 %v1650, %v1644
    %v1729 = vpack.c.b16 %v1651, %v1645
    %v1730 = vpack.c.b16 %v1652, %v1646
    %v1731 = vpack.c.b16 %v1653, %v1647
    %v1732 = vpack.c.b16 %v1654, %v1648
    %v1733 = vpack.c.b16 %v1655, %v1649
    %v1734 = vpack.c.b16 %v1662, %v1656
    %v1735 = vpack.c.b16 %v1663, %v1657
    %v1736 = vpack.c.b16 %v1664, %v1658
    %v1737 = vpack.c.b16 %v1665, %v1659
    %v1738 = vpack.c.b16 %v1666, %v1660
    %v1739 = vpack.c.b16 %v1667, %v1661
    %v1740 = vpack.c.b16 %v1674, %v1668
    %v1741 = vpack.c.b16 %v1675, %v1669
    %v1742 = vpack.c.b16 %v1676, %v1670
    %v1743 = vpack.c.b16 %v1677, %v1671
    %v1744 = vpack.c.b16 %v1678, %v1672
    %v1745 = vpack.c.b16 %v1679, %v1673
    %v1746 = vpack.c.b16 %v1686, %v1680
    %v1747 = vpack.c.b16 %v1687, %v1681
    %v1748 = vpack.c.b16 %v1688, %v1682
    %v1749 = vpack.c.b16 %v1689, %v1683
    %v1750 = vpack.c.b16 %v1690, %v1684
    %v1751 = vpack.c.b16 %v1691, %v1685
    %v1752 = vpack.c.b16 %v1698, %v1692
    %v1753 = vpack.c.b16 %v1699, %v1693
    %v1754 = vpack.c.b16 %v1700, %v1694
    %v1755 = vpack.c.b16 %v1701, %v1695
    %v1756 = vpack.c.b16 %v1702, %v1696
    %v1757 = vpack.c.b16 %v1703, %v1697
    %v1758 = vpack.c.b16 %v1710, %v1704
    %v1759 = vpack.c.b16 %v1711, %v1705
    %v1760 = vpack.c.b16 %v1712, %v1706
    %v1761 = vpack.c.b16 %v1713, %v1707
    %v1762 = vpack.c.b16 %v1714, %v1708
    %v1763 = vpack.c.b16 %v1715, %v1709
    %1812 = vmatpush.bf16.msra.mxu0 %v1758
    %1813 = vmatpush.bf16.msra.mxu0 %v1752
    %1814 = vmatpush.bf16.msra.mxu0 %v1746
    %1815 = vmatpush.bf16.msra.mxu0 %v1740
    %1816 = vmatpush.bf16.msra.mxu0 %v1734
    %1817 = vmatpush.bf16.msra.mxu0 %v1728
    %1818 = vmatpush.bf16.msra.mxu0 %v1722
    %1819 = vmatpush.bf16.msra.mxu0 %v1716
    %1820 = vmatmul.bf16.gmra.mxu0 %v1509
    %v1821 = vpop.f32.mrf.mxu0
    %v1822 = vadd.f32 %v1560, %v1821
    %v1823 = vpop.f32.mrf.mxu0
    %v1824 = vadd.f32 %v1560, %v1823
    %1825 = vdwg.mxu0
    %1826 = vmatpush.bf16.msra.mxu0 %v1759
    %1827 = vmatpush.bf16.msra.mxu0 %v1753
    %1828 = vmatpush.bf16.msra.mxu0 %v1747
    %1829 = vmatpush.bf16.msra.mxu0 %v1741
    %1830 = vmatpush.bf16.msra.mxu0 %v1735
    %1831 = vmatpush.bf16.msra.mxu0 %v1729
    %1832 = vmatpush.bf16.msra.mxu0 %v1723
    %1833 = vmatpush.bf16.msra.mxu0 %v1717
    %1834 = vmatmul.bf16.gmra.mxu0 %v1509
    %v1835 = vpop.f32.mrf.mxu0
    %v1836 = vadd.f32 %v1561, %v1835
    %v1837 = vpop.f32.mrf.mxu0
    %v1838 = vadd.f32 %v1561, %v1837
    %1839 = vdwg.mxu0
    %1840 = vmatpush.bf16.msra.mxu0 %v1760
    %1841 = vmatpush.bf16.msra.mxu0 %v1754
    %1842 = vmatpush.bf16.msra.mxu0 %v1748
    %1843 = vmatpush.bf16.msra.mxu0 %v1742
    %1844 = vmatpush.bf16.msra.mxu0 %v1736
    %1845 = vmatpush.bf16.msra.mxu0 %v1730
    %1846 = vmatpush.bf16.msra.mxu0 %v1724
    %1847 = vmatpush.bf16.msra.mxu0 %v1718
    %1848 = vmatmul.bf16.gmra.mxu0 %v1509
    %v1849 = vpop.f32.mrf.mxu0
    %v1850 = vadd.f32 %v1562, %v1849
    %v1851 = vpop.f32.mrf.mxu0
    %v1852 = vadd.f32 %v1562, %v1851
    %1853 = vdwg.mxu0
    %1854 = vmatpush.bf16.msra.mxu0 %v1761
    %1855 = vmatpush.bf16.msra.mxu0 %v1755
    %1856 = vmatpush.bf16.msra.mxu0 %v1749
    %1857 = vmatpush.bf16.msra.mxu0 %v1743
    %1858 = vmatpush.bf16.msra.mxu0 %v1737
    %1859 = vmatpush.bf16.msra.mxu0 %v1731
    %1860 = vmatpush.bf16.msra.mxu0 %v1725
    %1861 = vmatpush.bf16.msra.mxu0 %v1719
    %1862 = vmatmul.bf16.gmra.mxu0 %v1509
    %v1863 = vpop.f32.mrf.mxu0
    %v1864 = vadd.f32 %v1563, %v1863
    %v1865 = vpop.f32.mrf.mxu0
    %v1866 = vadd.f32 %v1563, %v1865
    %1867 = vdwg.mxu0
    %1868 = vmatpush.bf16.msra.mxu0 %v1762
    %1869 = vmatpush.bf16.msra.mxu0 %v1756
    %1870 = vmatpush.bf16.msra.mxu0 %v1750
    %1871 = vmatpush.bf16.msra.mxu0 %v1744
    %1872 = vmatpush.bf16.msra.mxu0 %v1738
    %1873 = vmatpush.bf16.msra.mxu0 %v1732
    %1874 = vmatpush.bf16.msra.mxu0 %v1726
    %1875 = vmatpush.bf16.msra.mxu0 %v1720
    %1876 = vmatmul.bf16.gmra.mxu0 %v1509
    %v1877 = vpop.f32.mrf.mxu0
    %v1878 = vadd.f32 %v1564, %v1877
    %v1879 = vpop.f32.mrf.mxu0
    %v1880 = vadd.f32 %v1564, %v1879
    %1881 = vdwg.mxu0
    %1882 = vmatpush.bf16.msra.mxu0 %v1763
    %1883 = vmatpush.bf16.msra.mxu0 %v1757
    %1884 = vmatpush.bf16.msra.mxu0 %v1751
    %1885 = vmatpush.bf16.msra.mxu0 %v1745
    %1886 = vmatpush.bf16.msra.mxu0 %v1739
    %1887 = vmatpush.bf16.msra.mxu0 %v1733
    %1888 = vmatpush.bf16.msra.mxu0 %v1727
    %1889 = vmatpush.bf16.msra.mxu0 %v1721
    %1890 = vmatmul.bf16.gmra.mxu0 %v1509
    %v1891 = vpop.f32.mrf.mxu0
    %v1892 = vadd.f32 %v1565, %v1891
    %v1893 = vpop.f32.mrf.mxu0
    %v1894 = vadd.f32 %v1565, %v1893
    %1895 = vdwg.mxu0
    %v1896 = vadd.f32 %v1822, %v1017
    %v1897 = vadd.f32 %v1836, %v1018
    %v1898 = vadd.f32 %v1850, %v1019
    %v1899 = vadd.f32 %v1864, %v1020
    %v1900 = vadd.f32 %v1878, %v1021
    %v1901 = vadd.f32 %v1892, %v1022
    %v1902 = vadd.f32 %v1824, %v1023
    %v1903 = vadd.f32 %v1838, %v1024
    %v1904 = vadd.f32 %v1852, %v1025
    %v1905 = vadd.f32 %v1866, %v1026
    %v1906 = vadd.f32 %v1880, %v1027
    %v1907 = vadd.f32 %v1894, %v1028
    %1908 = vst [vmem:[#allocation14] sm:$0xff] %v1896
    %1909 = vst [vmem:[#allocation14 + $0x8] sm:$0xff] %v1897
    %1910 = vst [vmem:[#allocation14 + $0x10] sm:$0xff] %v1898
    %1911 = vst [vmem:[#allocation14 + $0x18] sm:$0xff] %v1899
    %1912 = vst [vmem:[#allocation14 + $0x20] sm:$0xff] %v1900
    %1913 = vst [vmem:[#allocation14 + $0x28] sm:$0xff] %v1901
    %1914 = vst [vmem:[#allocation14 + $0x30] sm:$0xff] %v1902
    %1915 = vst [vmem:[#allocation14 + $0x38] sm:$0xff] %v1903
    %1916 = vst [vmem:[#allocation14 + $0x40] sm:$0xff] %v1904
    %1917 = vst [vmem:[#allocation14 + $0x48] sm:$0xff] %v1905
    %1918 = vst [vmem:[#allocation14 + $0x50] sm:$0xff] %v1906
    %1919 = vst [vmem:[#allocation14 + $0x58] sm:$0xff] %v1907
    // Predicated region
    $region66: #{tpu_custom_call.1} parent=1 // pred_check
      _
    $region67: #{tpu_custom_call.1} parent=1 // pred_check_branch
      %1921 = sbr.rel (0) target = $region69
    $region68: #{tpu_custom_call.1} parent=1 // pred_region
      %1923 = vsyncadd [#allocation4], 0
      %s1924 = sshll.u32 [#allocation14], 4
      %s1925 = int_to_ptr.vmem [resolvable:$true] %s1924
      %s1926 = sshll.u32 %s9, 4
      %s1927 = int_to_ptr.hbm [resolvable:$true] %s1926
      %1932 = dma.vmem_to_hbm [thread:$0]  %s1925, 1536, %s1927, [#allocation4], 768, 768, 48
    $region69: #{tpu_custom_call.1} parent=1 // pred_fallthru
      _
    // Predicated region
    $region70: #{tpu_custom_call.1} parent=1 // pred_check
      _
    $region71: #{tpu_custom_call.1} parent=1 // pred_check_branch
      %1934 = sbr.rel (0) target = $region73
    $region72: #{tpu_custom_call.1} parent=1 // pred_region
      %1936 = dma.done [#allocation4], 1536
    $region73: #{tpu_custom_call.1} parent=1 // pred_fallthru
      _
    %1937 = vsyncpa [#allocation3], 1
    %1938 = vsyncpa [#allocation6], 1
    %1939 = vsyncpa [#allocation9], 1
    %1940 = vsyncpa [#allocation12], 1
    %1941 = vsyncpa [#allocation4], 1

</llo_original>
